<compile_context>
chip_gen: v7x
topology: tpu7x:2x2x1
jax: 0.10.0
libtpu: 0.0.40
codegen_flags: <defaults>
</compile_context>

<pallas_src>
import functools

import jax
import jax.numpy as jnp
from jax import lax
from jax.experimental import pallas as pl
from jax.experimental.pallas import tpu as pltpu


def _hetconv_kernel(w_ref, b_ref, x_ref, o_ref, *, tap_offsets, m_out,
                    fuse_taps, c_in, precision):
    """One batch image per grid step.

    w_ref: (C_out, 9*C_in) fused dense weight (block-diag 3x3, 1x1 folded
           into the centre tap k=4)
    b_ref: (C_out, 1)      combined bias (gwc.bias + pwc.bias), f32
    x_ref: (C_in, L)       zero-padded image, spatial flattened with row
                           stride Wp = W+2 (plus tail padding)
    o_ref: (C_out, m_out)  flat output; pixel (h, w) lives at h*Wp + w,
                           columns w in {W, W+1} and the tail are garbage
                           and get sliced off in the wrapper.
    """
    if fuse_taps:
        # In-VMEM im2col: 9 statically shifted lane-windows -> (9*C_in, m_out)
        # slab, then a single lane-dense MXU GEMM.
        slab = jnp.concatenate(
            [x_ref[:, off:off + m_out] for off in tap_offsets], axis=0)
        acc = jnp.dot(w_ref[...], slab,
                      preferred_element_type=jnp.float32, precision=precision)
    else:
        # Fallback for C_in not a multiple of 8 (avoids sublane-relayout in
        # the concatenate): 9 accumulating tap matmuls.
        acc = jnp.zeros((o_ref.shape[0], m_out), jnp.float32)
        for k, off in enumerate(tap_offsets):
            acc += jnp.dot(w_ref[:, k * c_in:(k + 1) * c_in],
                           x_ref[:, off:off + m_out],
                           preferred_element_type=jnp.float32,
                           precision=precision)
    o_ref[...] = (acc + b_ref[...]).astype(o_ref.dtype)


@functools.partial(jax.jit, static_argnames=("g", "p", "compute_dtype",
                                              "precision"))
def hetconv_pallas(x_nchw, gwc_w, gwc_b, pwc_w, pwc_b, *, g, p,
                   compute_dtype=jnp.bfloat16, precision=None):
    """HetConv forward.

    x_nchw: (N, C_in, H, W)
    gwc_w:  (C_out, C_in // g, 3, 3), gwc_b: (C_out,)
    pwc_w:  (C_out, C_in // p, 1, 1), pwc_b: (C_out,)
    Returns (N, C_out, H, W) float32.

    Note: only pays off on the MXU when C_out >= 128 and 9*C_in is a 128
    multiple; at tiny channel counts this is a bandwidth exercise (and the
    in-kernel im2col keeps it at ~1x activation HBM traffic).
    """
    N, C_in, H, W = x_nchw.shape
    C_out = gwc_w.shape[0]
    # Guard the assumptions of the fused formulation (standard HetConv).
    assert gwc_w.shape[1:] == (C_in // g, 3, 3), "3x3 branch must be k=3"
    assert pwc_w.shape[1:] == (C_in // p, 1, 1), "1x1 branch must be k=1"
    assert C_in % g == 0 and C_out % g == 0, "g must divide C_in and C_out"
    assert C_in % p == 0 and C_out % p == 0, "p must divide C_in and C_out"
    icg, ocg = C_in // g, C_out // g
    icp, ocp = C_in // p, C_out // p
    K = 9 * C_in

    # --- fused dense block-diagonal weight, 1x1 folded into centre tap ------
    gw = jnp.transpose(gwc_w.reshape(C_out, icg, 9), (0, 2, 1))   # (C_out,9,icg)
    w3 = jnp.zeros((C_out, 9, C_in), jnp.float32)
    for gi in range(g):
        w3 = w3.at[gi * ocg:(gi + 1) * ocg, :,
                   gi * icg:(gi + 1) * icg].set(gw[gi * ocg:(gi + 1) * ocg])
    pw = pwc_w[:, :, 0, 0]                                        # (C_out, icp)
    for pi in range(p):
        w3 = w3.at[pi * ocp:(pi + 1) * ocp, 4,                    # k=4 <-> dy=dx=1
                   pi * icp:(pi + 1) * icp].add(pw[pi * ocp:(pi + 1) * ocp])
    w_dense = w3.reshape(C_out, K).astype(compute_dtype)
    bias = (gwc_b + pwc_b).reshape(C_out, 1).astype(jnp.float32)

    # --- pad once; NCHW is already channels-major, no transposes needed -----
    Wp = W + 2                         # padded row stride
    Mo = H * Wp                        # flat length covering all valid pixels
    Mo_pad = -(-Mo // 128) * 128       # lane-dense output stores
    max_off = 2 * Wp + 2               # largest tap offset
    L_need = Mo_pad + max_off
    eh = -(-max(L_need - (H + 2) * Wp, 0) // Wp)   # extra bottom rows
    L = (H + 2 + eh) * Wp
    x_pad = jnp.pad(x_nchw.astype(compute_dtype),
                    ((0, 0), (0, 0), (1, 1 + eh), (1, 1)))
    x_flat = x_pad.reshape(N, C_in, L)             # contiguous, free reshape
    tap_offsets = tuple(dy * Wp + dx for dy in range(3) for dx in range(3))

    # --- generation-aware VMEM budget ----------------------------------------
    itemsize = jnp.dtype(compute_dtype).itemsize
    try:
        vmem_cap = pltpu.get_tpu_info().vmem_capacity_bytes
    except Exception:  # be conservative if the query is unavailable
        vmem_cap = 64 * 1024 * 1024
    vmem_budget = int(0.72 * vmem_cap)
    need = (2 * C_in * L * itemsize        # padded image (double-buffered)
            + 2 * C_out * Mo_pad * 4       # output tile (double-buffered)
            + 2 * C_out * K * itemsize     # resident weight (auto 2-buffered)
            + 2 * C_out * 4                # bias
            + K * Mo_pad * itemsize        # in-VMEM im2col slab
            + C_out * Mo_pad * 4)          # f32 accumulator
    # (If `need` ever exceeds `vmem_budget`, spatial row-halo tiling is the
    #  fix — see TODO at top of file.)
    vmem_limit = int(min(vmem_budget, max(2 * need, 32 * 1024 * 1024)))

    fuse_taps = (C_in % 8 == 0)
    kernel = functools.partial(_hetconv_kernel, tap_offsets=tap_offsets,
                               m_out=Mo_pad, fuse_taps=fuse_taps, c_in=C_in,
                               precision=precision)

    cost = pl.CostEstimate(
        flops=2 * N * C_out * K * Mo_pad,
        transcendentals=0,
        bytes_accessed=(N * C_in * L * itemsize + C_out * K * itemsize
                        + N * C_out * Mo_pad * 4 + C_out * 4))

    out_flat = pl.pallas_call(
        kernel,
        out_shape=jax.ShapeDtypeStruct((N, C_out, Mo_pad), jnp.float32),
        grid_spec=pltpu.PrefetchScalarGridSpec(
            num_scalar_prefetch=0,
            grid=(N,),                      # one image per step; "parallel"
            in_specs=[                      # so v7x's two TCs split the batch
                pl.BlockSpec((C_out, K), lambda n: (0, 0)),         # weight
                pl.BlockSpec((C_out, 1), lambda n: (0, 0)),         # bias
                pl.BlockSpec((None, C_in, L), lambda n: (n, 0, 0)), # image
            ],
            out_specs=pl.BlockSpec((None, C_out, Mo_pad), lambda n: (n, 0, 0)),
        ),
        compiler_params=pltpu.CompilerParams(
            dimension_semantics=("parallel",),
            vmem_limit_bytes=vmem_limit),
        cost_estimate=cost,
    )(w_dense, bias, x_flat)

    # Drop the flat-layout garbage columns / tail: pixel (h, w) is at h*Wp + w.
    out = out_flat[:, :, :Mo].reshape(N, C_out, H, Wp)[:, :, :, :W]
    return out                                           # (N, C_out, H, W)


def hetconv_reference(x_nchw, gwc_w, gwc_b, pwc_w, pwc_b, *, g, p):
    """Pure-JAX reference (grouped convs via lax.conv_general_dilated)."""
    dn = lax.conv_dimension_numbers(x_nchw.shape, gwc_w.shape,
                                    ("NCHW", "OIHW", "NCHW"))
    y_g = lax.conv_general_dilated(x_nchw, gwc_w, (1, 1), ((1, 1), (1, 1)),
                                   dimension_numbers=dn,
                                   feature_group_count=g,
                                   precision=lax.Precision.HIGHEST)
    y_g = y_g + gwc_b[None, :, None, None]
    dn1 = lax.conv_dimension_numbers(x_nchw.shape, pwc_w.shape,
                                     ("NCHW", "OIHW", "NCHW"))
    y_p = lax.conv_general_dilated(x_nchw, pwc_w, (1, 1), ((0, 0), (0, 0)),
                                   dimension_numbers=dn1,
                                   feature_group_count=p,
                                   precision=lax.Precision.HIGHEST)
    y_p = y_p + pwc_b[None, :, None, None]
    return y_g + y_p


if __name__ == "__main__":
    # Small shapes consistent with HetConv (channels divisible by g and p).
    N, C_in, C_out, H, W = 2, 16, 16, 16, 16
    g, p = 4, 4

    key = jax.random.PRNGKey(0)
    k_x, k_gw, k_gb, k_pw, k_pb = jax.random.split(key, 5)

    x = jax.random.normal(k_x, (N, C_in, H, W), jnp.float32)
    gwc_w = 0.1 * jax.random.normal(k_gw, (C_out, C_in // g, 3, 3), jnp.float32)
    gwc_b = 0.1 * jax.random.normal(k_gb, (C_out,), jnp.float32)
    pwc_w = 0.1 * jax.random.normal(k_pw, (C_out, C_in // p, 1, 1), jnp.float32)
    pwc_b = 0.1 * jax.random.normal(k_pb, (C_out,), jnp.float32)

    ref = jax.block_until_ready(
        hetconv_reference(x, gwc_w, gwc_b, pwc_w, pwc_b, g=g, p=p))

    # Tight correctness check: f32 operands + HIGHEST precision.
    out_f32 = jax.block_until_ready(
        hetconv_pallas(x, gwc_w, gwc_b, pwc_w, pwc_b, g=g, p=p,
                       compute_dtype=jnp.float32,
                       precision=lax.Precision.HIGHEST))
    assert out_f32.shape == (N, C_out, H, W)
    err_f32 = float(jnp.max(jnp.abs(out_f32 - ref)))
    assert err_f32 < 1e-4, f"f32 mismatch vs reference: {err_f32}"

    # Default production path: bf16 operands, f32 accumulate, DEFAULT precision.
    out_bf16 = jax.block_until_ready(
        hetconv_pallas(x, gwc_w, gwc_b, pwc_w, pwc_b, g=g, p=p))
    assert out_bf16.shape == (N, C_out, H, W)
    err_bf16 = float(jnp.max(jnp.abs(out_bf16 - ref)))
    assert err_bf16 < 5e-2, f"bf16 mismatch vs reference: {err_bf16}"

    print("KERNEL_OK")
</pallas_src>

<mosaic_0001>
module attributes {stable_mosaic.version = 11 : i64} {
  func.func @_hetconv_kernel(%arg0: i32, %arg1: memref<16x144xf32, #tpu.memory_space<vmem>>, %arg2: memref<16x1xf32, #tpu.memory_space<vmem>>, %arg3: memref<1x16x432xf32, #tpu.memory_space<vmem>>, %arg4: memref<1x16x384xf32, #tpu.memory_space<vmem>>) attributes {dimension_semantics = [#tpu.dimension_semantics<parallel>], iteration_bounds = array<i64: 2>, scalar_prefetch = 0 : i64, scratch_operands = 0 : i64, tpu.core_type = #tpu.core_type<tc>, window_params = [{pipeline_mode = #tpu.pipeline_mode<synchronous>, transform_indices = @transform_0, window_bounds = array<i64: 16, 144>}, {pipeline_mode = #tpu.pipeline_mode<synchronous>, transform_indices = @transform_1, window_bounds = array<i64: 16, 1>}, {transform_indices = @transform_2, window_bounds = array<i64: 1, 16, 432>}, {transform_indices = @transform_3, window_bounds = array<i64: 1, 16, 384>}]} {
    %c0 = arith.constant 0 : index
    %c0_0 = arith.constant 0 : index
    %c0_1 = arith.constant 0 : index
    %0 = vector.load %arg3[%c0, %c0_0, %c0_1] : memref<1x16x432xf32, #tpu.memory_space<vmem>>, vector<1x16x384xf32>
    %1 = vector.shape_cast %0 : vector<1x16x384xf32> to vector<16x384xf32>
    %c0_2 = arith.constant 0 : index
    %c0_3 = arith.constant 0 : index
    %c1 = arith.constant 1 : index
    %2 = vector.load %arg3[%c0_2, %c0_3, %c1] : memref<1x16x432xf32, #tpu.memory_space<vmem>>, vector<1x16x384xf32>
    %3 = vector.shape_cast %2 : vector<1x16x384xf32> to vector<16x384xf32>
    %c0_4 = arith.constant 0 : index
    %c0_5 = arith.constant 0 : index
    %c2 = arith.constant 2 : index
    %4 = vector.load %arg3[%c0_4, %c0_5, %c2] : memref<1x16x432xf32, #tpu.memory_space<vmem>>, vector<1x16x384xf32>
    %5 = vector.shape_cast %4 : vector<1x16x384xf32> to vector<16x384xf32>
    %c0_6 = arith.constant 0 : index
    %c0_7 = arith.constant 0 : index
    %c18 = arith.constant 18 : index
    %6 = vector.load %arg3[%c0_6, %c0_7, %c18] : memref<1x16x432xf32, #tpu.memory_space<vmem>>, vector<1x16x384xf32>
    %7 = vector.shape_cast %6 : vector<1x16x384xf32> to vector<16x384xf32>
    %c0_8 = arith.constant 0 : index
    %c0_9 = arith.constant 0 : index
    %c19 = arith.constant 19 : index
    %8 = vector.load %arg3[%c0_8, %c0_9, %c19] : memref<1x16x432xf32, #tpu.memory_space<vmem>>, vector<1x16x384xf32>
    %9 = vector.shape_cast %8 : vector<1x16x384xf32> to vector<16x384xf32>
    %c0_10 = arith.constant 0 : index
    %c0_11 = arith.constant 0 : index
    %c20 = arith.constant 20 : index
    %10 = vector.load %arg3[%c0_10, %c0_11, %c20] : memref<1x16x432xf32, #tpu.memory_space<vmem>>, vector<1x16x384xf32>
    %11 = vector.shape_cast %10 : vector<1x16x384xf32> to vector<16x384xf32>
    %c0_12 = arith.constant 0 : index
    %c0_13 = arith.constant 0 : index
    %c36 = arith.constant 36 : index
    %12 = vector.load %arg3[%c0_12, %c0_13, %c36] : memref<1x16x432xf32, #tpu.memory_space<vmem>>, vector<1x16x384xf32>
    %13 = vector.shape_cast %12 : vector<1x16x384xf32> to vector<16x384xf32>
    %c0_14 = arith.constant 0 : index
    %c0_15 = arith.constant 0 : index
    %c37 = arith.constant 37 : index
    %14 = vector.load %arg3[%c0_14, %c0_15, %c37] : memref<1x16x432xf32, #tpu.memory_space<vmem>>, vector<1x16x384xf32>
    %15 = vector.shape_cast %14 : vector<1x16x384xf32> to vector<16x384xf32>
    %c0_16 = arith.constant 0 : index
    %c0_17 = arith.constant 0 : index
    %c38 = arith.constant 38 : index
    %16 = vector.load %arg3[%c0_16, %c0_17, %c38] : memref<1x16x432xf32, #tpu.memory_space<vmem>>, vector<1x16x384xf32>
    %17 = vector.shape_cast %16 : vector<1x16x384xf32> to vector<16x384xf32>
    %18 = tpu.concatenate %1, %3, %5, %7, %9, %11, %13, %15, %17 in 0 : vector<16x384xf32>, vector<16x384xf32>, vector<16x384xf32>, vector<16x384xf32>, vector<16x384xf32>, vector<16x384xf32>, vector<16x384xf32>, vector<16x384xf32>, vector<16x384xf32> -> vector<144x384xf32>
    %c0_18 = arith.constant 0 : index
    %c0_19 = arith.constant 0 : index
    %19 = vector.load %arg1[%c0_18, %c0_19] : memref<16x144xf32, #tpu.memory_space<vmem>>, vector<16x144xf32>
    %cst = arith.constant dense<0.000000e+00> : vector<16x384xf32>
    %20 = tpu.matmul %19, %18, %cst {dimension_numbers = #tpu.dot_dimension_numbers<[1], [0], [0], [1], [0, 0, 1, 1], [], []>, precision = #tpu.contract_precision<fp32>} : vector<16x144xf32>, vector<144x384xf32>, vector<16x384xf32> -> vector<16x384xf32>
    %c0_20 = arith.constant 0 : index
    %c0_21 = arith.constant 0 : index
    %21 = vector.load %arg2[%c0_20, %c0_21] : memref<16x1xf32, #tpu.memory_space<vmem>>, vector<16x1xf32>
    %22 = vector.broadcast %21 : vector<16x1xf32> to vector<16x384xf32>
    %23 = arith.addf %20, %22 : vector<16x384xf32>
    %c0_22 = arith.constant 0 : index
    %c0_23 = arith.constant 0 : index
    %c0_24 = arith.constant 0 : index
    %24 = vector.load %arg4[%c0_22, %c0_23, %c0_24] : memref<1x16x384xf32, #tpu.memory_space<vmem>>, vector<1x16x384xf32>
    %25 = vector.shape_cast %24 : vector<1x16x384xf32> to vector<16x384xf32>
    %26 = vector.shape_cast %23 : vector<16x384xf32> to vector<1x16x384xf32>
    tpu.vector_store %arg4[%c0_22, %c0_23, %c0_24], %26 {strides = array<i32>} : memref<1x16x384xf32, #tpu.memory_space<vmem>>, vector<1x16x384xf32>,
    return
  }
  func.func @transform_0(%arg0: i32) -> (i32, i32) {
    %c0_i32 = arith.constant 0 : i32
    %c0_i32_0 = arith.constant 0 : i32
    %c0_i32_1 = arith.constant 0 : i32
    return %c0_i32, %c0_i32_0 : i32, i32
  }
  func.func @transform_1(%arg0: i32) -> (i32, i32) {
    %c0_i32 = arith.constant 0 : i32
    %c0_i32_0 = arith.constant 0 : i32
    %c0_i32_1 = arith.constant 0 : i32
    return %c0_i32, %c0_i32_0 : i32, i32
  }
  func.func @transform_2(%arg0: i32) -> (i32, i32, i32) {
    %c0_i32 = arith.constant 0 : i32
    %c0_i32_0 = arith.constant 0 : i32
    %c0_i32_1 = arith.constant 0 : i32
    return %arg0, %c0_i32, %c0_i32_0 : i32, i32, i32
  }
  func.func @transform_3(%arg0: i32) -> (i32, i32, i32) {
    %c0_i32 = arith.constant 0 : i32
    %c0_i32_0 = arith.constant 0 : i32
    %c0_i32_1 = arith.constant 0 : i32
    return %arg0, %c0_i32, %c0_i32_0 : i32, i32, i32
  }
}

</mosaic_0001>

<llo_original>
// kernel: hetconv_pallas.1
$region0: #{hetconv_pallas.1}
  #allocation0 [shape = 'u32[]', space=smem, size = 0x4, offset = 0x4, fixed_abs, tag = 'smem constant byte address 0x4 - core index']
  #allocation1 [shape = 'u32[144,128]{1,0:T(1,128)}', space=vmem, size = 0x12000, scoped, tag = 'internal scratch']
  %s0 = inlined_call_operand.vmem [shape: f32[16,144], index: 0, kind: input, shape index: {}]
  %s1 = inlined_call_operand.vmem [shape: f32[16,1], index: 1, kind: input, shape index: {}]
  %s2 = inlined_call_operand.vmem [shape: f32[2,16,432], index: 2, kind: input, shape index: {}]
  %s3 = inlined_call_operand.vmem [shape: f32[2,16,384], index: 3, kind: output, shape index: {}]
  %s4 = sld [smem:[#allocation0]]
  $region45: #{hetconv_pallas.1} parent=0
    _
  %s6 = ssub.s32 1, %s4
  %s7 = scalar_select 0, %s6, %s4
  loop: start=0, step=1, limit=4
  $region2: #{hetconv_pallas.1} parent=0 // loop_pre_header
    _
  $region3: #{hetconv_pallas.1} parent=0 // loop_header
    %s9 = sphi 0, %s13
    %p10 = scmp.ge.s32.totalorder %s9, 4
    %s17 = sphi 0, %s17
    %s19 = sphi 0, %s17
    %s20 = sphi 0, %s19
    %s34 = sphi 0, %s20
    %s38 = sphi 0, %s38
    %s40 = sphi 0, %s38
    %s41 = sphi 0, %s40
    %s55 = sphi 0, %s41
    %s61 = sphi 0, %s63
    %s64 = sphi 0, %s61
    %s65 = sphi 0, %s64
    %s81 = sphi 0, %s65
    %s87 = sphi 0, %s89
    %s90 = sphi 0, %s87
    %s91 = sphi 0, %s90
    %s107 = sphi 0, %s91
  $region4: #{hetconv_pallas.1} parent=0 // loop_header_branch
    %12 = sbr.rel (%p10) target = $region8
  $region5: #{hetconv_pallas.1} parent=0 // loop_body
    %s14 = ssub.s32 %s9, 1
    %s15 = ssub.s32 %s9, 2
    %s16 = sadd.s32 %s9, 1
    %s18 = sadd.s32 %s17, 1
    %p21 = scmp.eq.s32.totalorder %s9, 1
    %p22 = scmp.ne.s32.totalorder %s17, %s19
    %p23 = scmp.eq.s32.totalorder %s9, 0
    %p24 = por %p22, %p23
    %p25 = scmp.ne.s32.totalorder %s17, %s19
    %p26 = scmp.eq.s32.totalorder %s14, 1
    %p27 = por %p25, %p26
    %p28 = scmp.ne.s32.totalorder %s19, %s20
    %p29 = scmp.eq.s32.totalorder %s14, 0
    %p30 = por %p28, %p29
    %p31 = scmp.ne.s32.totalorder %s19, %s20
    %p32 = scmp.eq.s32.totalorder %s15, 1
    %p33 = por %p31, %p32
    %p35 = scmp.ne.s32.totalorder %s20, %s34
    %p36 = scmp.eq.s32.totalorder %s15, 0
    %p37 = por %p35, %p36
    %s39 = sadd.s32 %s38, 1
    %p42 = scmp.eq.s32.totalorder %s9, 1
    %p43 = scmp.ne.s32.totalorder %s38, %s40
    %p44 = scmp.eq.s32.totalorder %s9, 0
    %p45 = por %p43, %p44
    %p46 = scmp.ne.s32.totalorder %s38, %s40
    %p47 = scmp.eq.s32.totalorder %s14, 1
    %p48 = por %p46, %p47
    %p49 = scmp.ne.s32.totalorder %s40, %s41
    %p50 = scmp.eq.s32.totalorder %s14, 0
    %p51 = por %p49, %p50
    %p52 = scmp.ne.s32.totalorder %s40, %s41
    %p53 = scmp.eq.s32.totalorder %s15, 1
    %p54 = por %p52, %p53
    %p56 = scmp.ne.s32.totalorder %s41, %s55
    %p57 = scmp.eq.s32.totalorder %s15, 0
    %p58 = por %p56, %p57
    %s59 = ssub.s32 %s9, %s16
    %p60 = scmp.eq.s32.totalorder %s59, 0
    %s62 = sadd.s32 %s61, 1
    %s63 = scalar_select %p60, %s61, %s62
    %p66 = pneg %p60
    %p67 = scmp.eq.s32.totalorder %s9, 1
    %p68 = por %p66, %p67
    %p69 = scmp.ne.s32.totalorder %s61, %s64
    %p70 = scmp.eq.s32.totalorder %s9, 0
    %p71 = por %p69, %p70
    %p72 = scmp.ne.s32.totalorder %s61, %s64
    %p73 = scmp.eq.s32.totalorder %s14, 1
    %p74 = por %p72, %p73
    %p75 = scmp.ne.s32.totalorder %s64, %s65
    %p76 = scmp.eq.s32.totalorder %s14, 0
    %p77 = por %p75, %p76
    %p78 = scmp.ne.s32.totalorder %s64, %s65
    %p79 = scmp.eq.s32.totalorder %s15, 1
    %p80 = por %p78, %p79
    %p82 = scmp.ne.s32.totalorder %s65, %s81
    %p83 = scmp.eq.s32.totalorder %s15, 0
    %p84 = por %p82, %p83
    %s85 = ssub.s32 %s9, %s16
    %p86 = scmp.eq.s32.totalorder %s85, 0
    %s88 = sadd.s32 %s87, 1
    %s89 = scalar_select %p86, %s87, %s88
    %p92 = pneg %p86
    %p93 = scmp.eq.s32.totalorder %s9, 1
    %p94 = por %p92, %p93
    %p95 = scmp.ne.s32.totalorder %s87, %s90
    %p96 = scmp.eq.s32.totalorder %s9, 0
    %p97 = por %p95, %p96
    %p98 = scmp.ne.s32.totalorder %s87, %s90
    %p99 = scmp.eq.s32.totalorder %s14, 1
    %p100 = por %p98, %p99
    %p101 = scmp.ne.s32.totalorder %s90, %s91
    %p102 = scmp.eq.s32.totalorder %s14, 0
    %p103 = por %p101, %p102
    %p104 = scmp.ne.s32.totalorder %s90, %s91
    %p105 = scmp.eq.s32.totalorder %s15, 1
    %p106 = por %p104, %p105
    %p108 = scmp.ne.s32.totalorder %s91, %s107
    %p109 = scmp.eq.s32.totalorder %s15, 0
    %p110 = por %p108, %p109
    %p111 = scmp.le.s32.totalorder 1, %s9
    %p112 = scmp.lt.s32.totalorder %s9, 3
    %p113 = pnand %p111, %p112
    %p114 = pneg %p113
    // Predicated region
    $region9: #{hetconv_pallas.1} parent=5 // pred_check
      _
    $region10: #{hetconv_pallas.1} parent=5 // pred_check_branch
      %116 = sbr.rel (%p113) target = $region12
    $region11: #{hetconv_pallas.1} parent=5 // pred_region
      %s117 = ssub.s32 %s9, 1
      // Predicated region
      $region13: #{hetconv_pallas.1} parent=11 // pred_check
        %p118 = pneg %p30
      $region14: #{hetconv_pallas.1} parent=11 // pred_check_branch
        %120 = sbr.rel (%p118) target = $region16
      $region15: #{hetconv_pallas.1} parent=11 // pred_region
        _
      $region16: #{hetconv_pallas.1} parent=11 // pred_fallthru
        _
      // Predicated region
      $region17: #{hetconv_pallas.1} parent=11 // pred_check
        %p121 = pneg %p51
      $region18: #{hetconv_pallas.1} parent=11 // pred_check_branch
        %123 = sbr.rel (%p121) target = $region20
      $region19: #{hetconv_pallas.1} parent=11 // pred_region
        _
      $region20: #{hetconv_pallas.1} parent=11 // pred_fallthru
        _
    $region12: #{hetconv_pallas.1} parent=5 // pred_fallthru
      _
    %p124 = scmp.lt.s32.totalorder %s9, 2
    // Predicated region
    $region21: #{hetconv_pallas.1} parent=5 // pred_check
      %p125 = pneg %p124
    $region22: #{hetconv_pallas.1} parent=5 // pred_check_branch
      %127 = sbr.rel (%p125) target = $region24
    $region23: #{hetconv_pallas.1} parent=5 // pred_region
      // Predicated region
      $region25: #{hetconv_pallas.1} parent=23 // pred_check
        %p128 = pneg %p71
      $region26: #{hetconv_pallas.1} parent=23 // pred_check_branch
        %130 = sbr.rel (%p128) target = $region28
      $region27: #{hetconv_pallas.1} parent=23 // pred_region
        %p131 = scmp.lt.s32.totalorder %s9, 1
        %s132 = scalar_select %p131, %s9, 1
        %s133 = smul.addr %s132, 8
        %s134 = smul.addr %s133, 8
        %s135 = scalar_lea.vmem %s2, %s134
      $region28: #{hetconv_pallas.1} parent=23 // pred_fallthru
        _
    $region24: #{hetconv_pallas.1} parent=5 // pred_fallthru
      _
    %p136 = scmp.le.s32.totalorder 1, %s9
    %p137 = scmp.lt.s32.totalorder %s9, 3
    %p138 = pnand %p136, %p137
    %p139 = pneg %p138
    // Predicated region
    $region29: #{hetconv_pallas.1} parent=5 // pred_check
      _
    $region30: #{hetconv_pallas.1} parent=5 // pred_check_branch
      %141 = sbr.rel (%p138) target = $region32
    $region31: #{hetconv_pallas.1} parent=5 // pred_region
      %s142 = ssub.s32 %s9, 1
      %p143 = pneg %p30
      %p144 = pneg %p27
      %p145 = pneg %p51
      %p146 = pneg %p48
      %p147 = scmp.lt.s32.totalorder %s14, 1
      %s148 = scalar_select %p147, %s14, 1
      %s149 = smul.addr %s148, 8
      %s150 = smul.addr %s149, 8
      %s151 = scalar_lea.vmem %s2, %s150
      %p152 = pneg %p77
      %p153 = pneg %p74
      %p154 = pneg %p103
      %p155 = pneg %p100
      %p156 = scmp.lt.s32.totalorder %s14, 1
      %s157 = scalar_select %p156, %s14, 1
      %s158 = smul.addr %s157, 6
      %s159 = smul.addr %s158, 8
      %s160 = scalar_lea.vmem %s3, %s159
      %p161 = scmp.lt.s32.totalorder %s14, 1
      %s162 = scalar_select %p161, %s14, 1
      %s163 = smul.addr %s162, 8
      %s164 = smul.addr %s163, 8
      %s165 = scalar_lea.vmem %s2, %s164
      %p166 = scmp.lt.s32.totalorder %s14, 1
      %s167 = scalar_select %p166, %s14, 1
      %s168 = smul.addr %s167, 6
      %s169 = smul.addr %s168, 8
      %s170 = scalar_lea.vmem %s3, %s169
      %v171 = vld [vmem:[%s165] sm:$0xff]
      %v172 = vld [vmem:[%s165 + $0x8] sm:$0xff]
      %v173 = vld [vmem:[%s165 + $0x10] sm:$0xff]
      %v174 = vld [vmem:[%s165 + $0x20] sm:$0xff]
      %v175 = vld [vmem:[%s165 + $0x28] sm:$0xff]
      %v176 = vld [vmem:[%s165 + $0x30] sm:$0xff]
      %v177 = vld [vmem:[%s165 + $0x18] sm:$0xff]
      %v178 = vld [vmem:[%s165 + $0x38] sm:$0xff]
      %187 = vrot.lane.b32.xlu0 %v171, 127
      %v188 = vpop.permute.xlu0 %187
      %189 = vrot.lane.b32.xlu0 %v172, 127
      %v190 = vpop.permute.xlu0 %189
      %191 = vrot.lane.b32.xlu0 %v173, 127
      %v192 = vpop.permute.xlu0 %191
      %193 = vrot.lane.b32.xlu0 %v177, 127
      %v194 = vpop.permute.xlu0 %193
      %195 = vrot.lane.b32.xlu0 %v174, 127
      %v196 = vpop.permute.xlu0 %195
      %197 = vrot.lane.b32.xlu0 %v175, 127
      %v198 = vpop.permute.xlu0 %197
      %199 = vrot.lane.b32.xlu0 %v176, 127
      %v200 = vpop.permute.xlu0 %199
      %201 = vrot.lane.b32.xlu0 %v178, 127
      %v202 = vpop.permute.xlu0 %201
      %vm203 = vcmask 1039360
      %v204 = vsel %vm203, %v188, %v190
      %v205 = vsel %vm203, %v190, %v192
      %v206 = vsel %vm203, %v192, %v194
      %v207 = vsel %vm203, %v196, %v198
      %v208 = vsel %vm203, %v198, %v200
      %v209 = vsel %vm203, %v200, %v202
      %216 = vrot.lane.b32.xlu0 %v171, 126
      %v217 = vpop.permute.xlu0 %216
      %218 = vrot.lane.b32.xlu0 %v172, 126
      %v219 = vpop.permute.xlu0 %218
      %220 = vrot.lane.b32.xlu0 %v173, 126
      %v221 = vpop.permute.xlu0 %220
      %222 = vrot.lane.b32.xlu0 %v177, 126
      %v223 = vpop.permute.xlu0 %222
      %224 = vrot.lane.b32.xlu0 %v174, 126
      %v225 = vpop.permute.xlu0 %224
      %226 = vrot.lane.b32.xlu0 %v175, 126
      %v227 = vpop.permute.xlu0 %226
      %228 = vrot.lane.b32.xlu0 %v176, 126
      %v229 = vpop.permute.xlu0 %228
      %230 = vrot.lane.b32.xlu0 %v178, 126
      %v231 = vpop.permute.xlu0 %230
      %vm232 = vcmask 1031168
      %v233 = vsel %vm232, %v217, %v219
      %v234 = vsel %vm232, %v219, %v221
      %v235 = vsel %vm232, %v221, %v223
      %v236 = vsel %vm232, %v225, %v227
      %v237 = vsel %vm232, %v227, %v229
      %v238 = vsel %vm232, %v229, %v231
      %245 = vrot.lane.b32.xlu0 %v171, 110
      %v246 = vpop.permute.xlu0 %245
      %247 = vrot.lane.b32.xlu0 %v172, 110
      %v248 = vpop.permute.xlu0 %247
      %249 = vrot.lane.b32.xlu0 %v173, 110
      %v250 = vpop.permute.xlu0 %249
      %251 = vrot.lane.b32.xlu0 %v177, 110
      %v252 = vpop.permute.xlu0 %251
      %253 = vrot.lane.b32.xlu0 %v174, 110
      %v254 = vpop.permute.xlu0 %253
      %255 = vrot.lane.b32.xlu0 %v175, 110
      %v256 = vpop.permute.xlu0 %255
      %257 = vrot.lane.b32.xlu0 %v176, 110
      %v258 = vpop.permute.xlu0 %257
      %259 = vrot.lane.b32.xlu0 %v178, 110
      %v260 = vpop.permute.xlu0 %259
      %vm261 = vcmask 900096
      %v262 = vsel %vm261, %v246, %v248
      %v263 = vsel %vm261, %v248, %v250
      %v264 = vsel %vm261, %v250, %v252
      %v265 = vsel %vm261, %v254, %v256
      %v266 = vsel %vm261, %v256, %v258
      %v267 = vsel %vm261, %v258, %v260
      %274 = vrot.lane.b32.xlu0 %v171, 109
      %v275 = vpop.permute.xlu0 %274
      %276 = vrot.lane.b32.xlu0 %v172, 109
      %v277 = vpop.permute.xlu0 %276
      %278 = vrot.lane.b32.xlu0 %v173, 109
      %v279 = vpop.permute.xlu0 %278
      %280 = vrot.lane.b32.xlu0 %v177, 109
      %v281 = vpop.permute.xlu0 %280
      %282 = vrot.lane.b32.xlu0 %v174, 109
      %v283 = vpop.permute.xlu0 %282
      %284 = vrot.lane.b32.xlu0 %v175, 109
      %v285 = vpop.permute.xlu0 %284
      %286 = vrot.lane.b32.xlu0 %v176, 109
      %v287 = vpop.permute.xlu0 %286
      %288 = vrot.lane.b32.xlu0 %v178, 109
      %v289 = vpop.permute.xlu0 %288
      %vm290 = vcmask 891904
      %v291 = vsel %vm290, %v275, %v277
      %v292 = vsel %vm290, %v277, %v279
      %v293 = vsel %vm290, %v279, %v281
      %v294 = vsel %vm290, %v283, %v285
      %v295 = vsel %vm290, %v285, %v287
      %v296 = vsel %vm290, %v287, %v289
      %303 = vrot.lane.b32.xlu0 %v171, 108
      %v304 = vpop.permute.xlu0 %303
      %305 = vrot.lane.b32.xlu0 %v172, 108
      %v306 = vpop.permute.xlu0 %305
      %307 = vrot.lane.b32.xlu0 %v173, 108
      %v308 = vpop.permute.xlu0 %307
      %309 = vrot.lane.b32.xlu0 %v177, 108
      %v310 = vpop.permute.xlu0 %309
      %311 = vrot.lane.b32.xlu0 %v174, 108
      %v312 = vpop.permute.xlu0 %311
      %313 = vrot.lane.b32.xlu0 %v175, 108
      %v314 = vpop.permute.xlu0 %313
      %315 = vrot.lane.b32.xlu0 %v176, 108
      %v316 = vpop.permute.xlu0 %315
      %317 = vrot.lane.b32.xlu0 %v178, 108
      %v318 = vpop.permute.xlu0 %317
      %vm319 = vcmask 883712
      %v320 = vsel %vm319, %v304, %v306
      %v321 = vsel %vm319, %v306, %v308
      %v322 = vsel %vm319, %v308, %v310
      %v323 = vsel %vm319, %v312, %v314
      %v324 = vsel %vm319, %v314, %v316
      %v325 = vsel %vm319, %v316, %v318
      %332 = vrot.lane.b32.xlu0 %v171, 92
      %v333 = vpop.permute.xlu0 %332
      %334 = vrot.lane.b32.xlu0 %v172, 92
      %v335 = vpop.permute.xlu0 %334
      %336 = vrot.lane.b32.xlu0 %v173, 92
      %v337 = vpop.permute.xlu0 %336
      %338 = vrot.lane.b32.xlu0 %v177, 92
      %v339 = vpop.permute.xlu0 %338
      %340 = vrot.lane.b32.xlu0 %v174, 92
      %v341 = vpop.permute.xlu0 %340
      %342 = vrot.lane.b32.xlu0 %v175, 92
      %v343 = vpop.permute.xlu0 %342
      %344 = vrot.lane.b32.xlu0 %v176, 92
      %v345 = vpop.permute.xlu0 %344
      %346 = vrot.lane.b32.xlu0 %v178, 92
      %v347 = vpop.permute.xlu0 %346
      %vm348 = vcmask 752640
      %v349 = vsel %vm348, %v333, %v335
      %v350 = vsel %vm348, %v335, %v337
      %v351 = vsel %vm348, %v337, %v339
      %v352 = vsel %vm348, %v341, %v343
      %v353 = vsel %vm348, %v343, %v345
      %v354 = vsel %vm348, %v345, %v347
      %361 = vrot.lane.b32.xlu0 %v171, 91
      %v362 = vpop.permute.xlu0 %361
      %363 = vrot.lane.b32.xlu0 %v172, 91
      %v364 = vpop.permute.xlu0 %363
      %365 = vrot.lane.b32.xlu0 %v173, 91
      %v366 = vpop.permute.xlu0 %365
      %367 = vrot.lane.b32.xlu0 %v177, 91
      %v368 = vpop.permute.xlu0 %367
      %369 = vrot.lane.b32.xlu0 %v174, 91
      %v370 = vpop.permute.xlu0 %369
      %371 = vrot.lane.b32.xlu0 %v175, 91
      %v372 = vpop.permute.xlu0 %371
      %373 = vrot.lane.b32.xlu0 %v176, 91
      %v374 = vpop.permute.xlu0 %373
      %375 = vrot.lane.b32.xlu0 %v178, 91
      %v376 = vpop.permute.xlu0 %375
      %vm377 = vcmask 744448
      %v378 = vsel %vm377, %v362, %v364
      %v379 = vsel %vm377, %v364, %v366
      %v380 = vsel %vm377, %v366, %v368
      %v381 = vsel %vm377, %v370, %v372
      %v382 = vsel %vm377, %v372, %v374
      %v383 = vsel %vm377, %v374, %v376
      %390 = vrot.lane.b32.xlu0 %v171, 90
      %v391 = vpop.permute.xlu0 %390
      %392 = vrot.lane.b32.xlu0 %v172, 90
      %v393 = vpop.permute.xlu0 %392
      %394 = vrot.lane.b32.xlu0 %v173, 90
      %v395 = vpop.permute.xlu0 %394
      %396 = vrot.lane.b32.xlu0 %v177, 90
      %v397 = vpop.permute.xlu0 %396
      %398 = vrot.lane.b32.xlu0 %v174, 90
      %v399 = vpop.permute.xlu0 %398
      %400 = vrot.lane.b32.xlu0 %v175, 90
      %v401 = vpop.permute.xlu0 %400
      %402 = vrot.lane.b32.xlu0 %v176, 90
      %v403 = vpop.permute.xlu0 %402
      %404 = vrot.lane.b32.xlu0 %v178, 90
      %v405 = vpop.permute.xlu0 %404
      %vm406 = vcmask 736256
      %v407 = vsel %vm406, %v391, %v393
      %v408 = vsel %vm406, %v393, %v395
      %v409 = vsel %vm406, %v395, %v397
      %v410 = vsel %vm406, %v399, %v401
      %v411 = vsel %vm406, %v401, %v403
      %v412 = vsel %vm406, %v403, %v405
      %v419 = vld [vmem:[%s0] sm:$0xff]
      %v420 = vld [vmem:[%s0 + $0x8] sm:$0xff]
      %v421 = vld [vmem:[%s0 + $0x10] sm:$0xff]
      %v422 = vld [vmem:[%s0 + $0x18] sm:$0xff]
      %v423 = vld [vmem:[%s1] sm:$0xff]
      %v424 = vld [vmem:[%s1 + $0x8] sm:$0xff]
      %426 = vset.pattern.permute.xlu0 0
      %427 = vperm.xlu0 %426, %v423
      %v428 = vpop.permute.xlu0 %427
      %431 = vset.pattern.permute.xlu0 0
      %432 = vperm.xlu0 %431, %v424
      %v433 = vpop.permute.xlu0 %432
      %vm435 = vcmask 130048
      %v437 = vsel %vm435, %v420, 0
      %v440 = vsel %vm435, %v422, 0
      %v442 = vand.u32 %v172, 4294901760
      %443 = vmatprep.subr.mxu0 %v442
      %v444 = vand.u32 %v171, 4294901760
      %445 = vmatpush1.msra.mxu0 %v444
      %v446 = vand.u32 %v175, 4294901760
      %447 = vmatprep.subr.mxu0 %v446
      %v448 = vand.u32 %v174, 4294901760
      %449 = vmatpush1.msra.mxu0 %v448
      %v450 = vand.u32 %v205, 4294901760
      %451 = vmatprep.subr.mxu0 %v450
      %v452 = vand.u32 %v204, 4294901760
      %453 = vmatpush1.msra.mxu0 %v452
      %v454 = vand.u32 %v208, 4294901760
      %455 = vmatprep.subr.mxu0 %v454
      %v456 = vand.u32 %v207, 4294901760
      %457 = vmatpush1.msra.mxu0 %v456
      %v458 = vand.u32 %v234, 4294901760
      %459 = vmatprep.subr.mxu0 %v458
      %v460 = vand.u32 %v233, 4294901760
      %461 = vmatpush1.msra.mxu0 %v460
      %v462 = vand.u32 %v237, 4294901760
      %463 = vmatprep.subr.mxu0 %v462
      %v464 = vand.u32 %v236, 4294901760
      %465 = vmatpush1.msra.mxu0 %v464
      %v466 = vand.u32 %v263, 4294901760
      %467 = vmatprep.subr.mxu0 %v466
      %v468 = vand.u32 %v262, 4294901760
      %469 = vmatpush1.msra.mxu0 %v468
      %v470 = vand.u32 %v266, 4294901760
      %471 = vmatprep.subr.mxu0 %v470
      %v472 = vand.u32 %v265, 4294901760
      %473 = vmatpush1.msra.mxu0 %v472
      %v474 = vand.u32 %v292, 4294901760
      %475 = vmatprep.subr.mxu0 %v474
      %v476 = vand.u32 %v291, 4294901760
      %477 = vmatpush1.msra.mxu0 %v476
      %v478 = vand.u32 %v295, 4294901760
      %479 = vmatprep.subr.mxu0 %v478
      %v480 = vand.u32 %v294, 4294901760
      %481 = vmatpush1.msra.mxu0 %v480
      %v482 = vand.u32 %v321, 4294901760
      %483 = vmatprep.subr.mxu0 %v482
      %v484 = vand.u32 %v320, 4294901760
      %485 = vmatpush1.msra.mxu0 %v484
      %v486 = vand.u32 %v324, 4294901760
      %487 = vmatprep.subr.mxu0 %v486
      %v488 = vand.u32 %v323, 4294901760
      %489 = vmatpush1.msra.mxu0 %v488
      %v490 = vand.u32 %v350, 4294901760
      %491 = vmatprep.subr.mxu0 %v490
      %v492 = vand.u32 %v349, 4294901760
      %493 = vmatpush1.msra.mxu0 %v492
      %v494 = vand.u32 %v353, 4294901760
      %495 = vmatprep.subr.mxu0 %v494
      %v496 = vand.u32 %v352, 4294901760
      %497 = vmatpush1.msra.mxu0 %v496
      %v498 = vand.u32 %v379, 4294901760
      %499 = vmatprep.subr.mxu0 %v498
      %v500 = vand.u32 %v378, 4294901760
      %501 = vmatpush1.msra.mxu0 %v500
      %v502 = vand.u32 %v382, 4294901760
      %503 = vmatprep.subr.mxu0 %v502
      %v504 = vand.u32 %v381, 4294901760
      %505 = vmatpush1.msra.mxu0 %v504
      %v506 = vand.u32 %v408, 4294901760
      %507 = vmatprep.subr.mxu0 %v506
      %v508 = vand.u32 %v407, 4294901760
      %509 = vmatpush1.msra.mxu0 %v508
      %v510 = vand.u32 %v411, 4294901760
      %511 = vmatprep.subr.mxu0 %v510
      %v512 = vand.u32 %v410, 4294901760
      %513 = vmatpush1.msra.mxu0 %v512
      %514 = vmatprep.subr.mxu0 0.0
      %515 = vmatpush1.msra.mxu0 0.0
      %516 = vmatprep.subr.mxu0 0.0
      %517 = vmatpush1.msra.mxu0 0.0
      %518 = vmatprep.subr.mxu0 0.0
      %519 = vmatpush1.msra.mxu0 0.0
      %520 = vmatprep.subr.mxu0 0.0
      %521 = vmatpush1.msra.mxu0 0.0
      %522 = vmatprep.subr.mxu0 0.0
      %523 = vmatpush1.msra.mxu0 0.0
      %524 = vmatprep.subr.mxu0 0.0
      %525 = vmatpush1.msra.mxu0 0.0
      %526 = vmatprep.subr.mxu0 0.0
      %527 = vmatpush1.msra.mxu0 0.0
      %528 = vmatprep.subr.mxu0 0.0
      %529 = vmatpush1.msra.mxu0 0.0
      %530 = vmatprep.subr.mxu0 0.0
      %531 = vmatpush1.msra.mxu0 0.0
      %532 = vmatprep.subr.mxu0 0.0
      %533 = vmatpush1.msra.mxu0 0.0
      %534 = vmatprep.subr.mxu0 0.0
      %535 = vmatpush1.msra.mxu0 0.0
      %536 = vmatprep.subr.mxu0 0.0
      %537 = vmatpush1.msra.mxu0 0.0
      %538 = vmatprep.subr.mxu0 0.0
      %539 = vmatpush1.msra.mxu0 0.0
      %540 = vmatprep.subr.mxu0 0.0
      %541 = vmatpush1.msra.mxu0 0.0
      %v542 = vand.u32 %v437, 4294901760
      %v543 = vsub.f32 %v437, %v542
      %v544 = vand.u32 %v543, 4294901760
      %v545 = vsub.f32 %v543, %v544
      %v546 = vand.u32 %v545, 4294901760
      %547 = vmatprep.mubr.f32.mxu0 %v546
      %v548 = vand.u32 %v419, 4294901760
      %v549 = vsub.f32 %v419, %v548
      %v550 = vand.u32 %v549, 4294901760
      %v551 = vsub.f32 %v549, %v550
      %v552 = vand.u32 %v551, 4294901760
      %553 = vmatmul.mubr.f32.gmra.mrb[0].mxu0 %v552
      %v554 = vpop.f32.mrb[0].mxu0
      %v555 = vadd.f32 %v428, %v554
      %v556 = vpop.f32.mrb[0].mxu0
      %v557 = vadd.f32 %v428, %v556
      %v558 = vand.u32 %v440, 4294901760
      %v559 = vsub.f32 %v440, %v558
      %v560 = vand.u32 %v559, 4294901760
      %v561 = vsub.f32 %v559, %v560
      %v562 = vand.u32 %v561, 4294901760
      %563 = vmatprep.mubr.f32.mxu0 %v562
      %v564 = vand.u32 %v421, 4294901760
      %v565 = vsub.f32 %v421, %v564
      %v566 = vand.u32 %v565, 4294901760
      %v567 = vsub.f32 %v565, %v566
      %v568 = vand.u32 %v567, 4294901760
      %569 = vmatmul.mubr.f32.gmra.mrb[0].mxu0 %v568
      %v570 = vpop.f32.mrb[0].mxu0
      %v571 = vadd.f32 %v433, %v570
      %v572 = vpop.f32.mrb[0].mxu0
      %v573 = vadd.f32 %v433, %v572
      %574 = vdwg.mxu0
      %v575 = vand.u32 %v172, 4294901760
      %v576 = vsub.f32 %v172, %v575
      %v577 = vand.u32 %v576, 4294901760
      %v578 = vsub.f32 %v576, %v577
      %v579 = vand.u32 %v578, 4294901760
      %580 = vmatprep.subr.mxu0 %v579
      %v581 = vand.u32 %v171, 4294901760
      %v582 = vsub.f32 %v171, %v581
      %v583 = vand.u32 %v582, 4294901760
      %v584 = vsub.f32 %v582, %v583
      %v585 = vand.u32 %v584, 4294901760
      %586 = vmatpush1.msra.mxu0 %v585
      %v587 = vand.u32 %v175, 4294901760
      %v588 = vsub.f32 %v175, %v587
      %v589 = vand.u32 %v588, 4294901760
      %v590 = vsub.f32 %v588, %v589
      %v591 = vand.u32 %v590, 4294901760
      %592 = vmatprep.subr.mxu0 %v591
      %v593 = vand.u32 %v174, 4294901760
      %v594 = vsub.f32 %v174, %v593
      %v595 = vand.u32 %v594, 4294901760
      %v596 = vsub.f32 %v594, %v595
      %v597 = vand.u32 %v596, 4294901760
      %598 = vmatpush1.msra.mxu0 %v597
      %v599 = vand.u32 %v205, 4294901760
      %v600 = vsub.f32 %v205, %v599
      %v601 = vand.u32 %v600, 4294901760
      %v602 = vsub.f32 %v600, %v601
      %v603 = vand.u32 %v602, 4294901760
      %604 = vmatprep.subr.mxu0 %v603
      %v605 = vand.u32 %v204, 4294901760
      %v606 = vsub.f32 %v204, %v605
      %v607 = vand.u32 %v606, 4294901760
      %v608 = vsub.f32 %v606, %v607
      %v609 = vand.u32 %v608, 4294901760
      %610 = vmatpush1.msra.mxu0 %v609
      %v611 = vand.u32 %v208, 4294901760
      %v612 = vsub.f32 %v208, %v611
      %v613 = vand.u32 %v612, 4294901760
      %v614 = vsub.f32 %v612, %v613
      %v615 = vand.u32 %v614, 4294901760
      %616 = vmatprep.subr.mxu0 %v615
      %v617 = vand.u32 %v207, 4294901760
      %v618 = vsub.f32 %v207, %v617
      %v619 = vand.u32 %v618, 4294901760
      %v620 = vsub.f32 %v618, %v619
      %v621 = vand.u32 %v620, 4294901760
      %622 = vmatpush1.msra.mxu0 %v621
      %v623 = vand.u32 %v234, 4294901760
      %v624 = vsub.f32 %v234, %v623
      %v625 = vand.u32 %v624, 4294901760
      %v626 = vsub.f32 %v624, %v625
      %v627 = vand.u32 %v626, 4294901760
      %628 = vmatprep.subr.mxu0 %v627
      %v629 = vand.u32 %v233, 4294901760
      %v630 = vsub.f32 %v233, %v629
      %v631 = vand.u32 %v630, 4294901760
      %v632 = vsub.f32 %v630, %v631
      %v633 = vand.u32 %v632, 4294901760
      %634 = vmatpush1.msra.mxu0 %v633
      %v635 = vand.u32 %v237, 4294901760
      %v636 = vsub.f32 %v237, %v635
      %v637 = vand.u32 %v636, 4294901760
      %v638 = vsub.f32 %v636, %v637
      %v639 = vand.u32 %v638, 4294901760
      %640 = vmatprep.subr.mxu0 %v639
      %v641 = vand.u32 %v236, 4294901760
      %v642 = vsub.f32 %v236, %v641
      %v643 = vand.u32 %v642, 4294901760
      %v644 = vsub.f32 %v642, %v643
      %v645 = vand.u32 %v644, 4294901760
      %646 = vmatpush1.msra.mxu0 %v645
      %v647 = vand.u32 %v263, 4294901760
      %v648 = vsub.f32 %v263, %v647
      %v649 = vand.u32 %v648, 4294901760
      %v650 = vsub.f32 %v648, %v649
      %v651 = vand.u32 %v650, 4294901760
      %652 = vmatprep.subr.mxu0 %v651
      %v653 = vand.u32 %v262, 4294901760
      %v654 = vsub.f32 %v262, %v653
      %v655 = vand.u32 %v654, 4294901760
      %v656 = vsub.f32 %v654, %v655
      %v657 = vand.u32 %v656, 4294901760
      %658 = vmatpush1.msra.mxu0 %v657
      %v659 = vand.u32 %v266, 4294901760
      %v660 = vsub.f32 %v266, %v659
      %v661 = vand.u32 %v660, 4294901760
      %v662 = vsub.f32 %v660, %v661
      %v663 = vand.u32 %v662, 4294901760
      %664 = vmatprep.subr.mxu0 %v663
      %v665 = vand.u32 %v265, 4294901760
      %v666 = vsub.f32 %v265, %v665
      %v667 = vand.u32 %v666, 4294901760
      %v668 = vsub.f32 %v666, %v667
      %v669 = vand.u32 %v668, 4294901760
      %670 = vmatpush1.msra.mxu0 %v669
      %v671 = vand.u32 %v292, 4294901760
      %v672 = vsub.f32 %v292, %v671
      %v673 = vand.u32 %v672, 4294901760
      %v674 = vsub.f32 %v672, %v673
      %v675 = vand.u32 %v674, 4294901760
      %676 = vmatprep.subr.mxu0 %v675
      %v677 = vand.u32 %v291, 4294901760
      %v678 = vsub.f32 %v291, %v677
      %v679 = vand.u32 %v678, 4294901760
      %v680 = vsub.f32 %v678, %v679
      %v681 = vand.u32 %v680, 4294901760
      %682 = vmatpush1.msra.mxu0 %v681
      %v683 = vand.u32 %v295, 4294901760
      %v684 = vsub.f32 %v295, %v683
      %v685 = vand.u32 %v684, 4294901760
      %v686 = vsub.f32 %v684, %v685
      %v687 = vand.u32 %v686, 4294901760
      %688 = vmatprep.subr.mxu0 %v687
      %v689 = vand.u32 %v294, 4294901760
      %v690 = vsub.f32 %v294, %v689
      %v691 = vand.u32 %v690, 4294901760
      %v692 = vsub.f32 %v690, %v691
      %v693 = vand.u32 %v692, 4294901760
      %694 = vmatpush1.msra.mxu0 %v693
      %v695 = vand.u32 %v321, 4294901760
      %v696 = vsub.f32 %v321, %v695
      %v697 = vand.u32 %v696, 4294901760
      %v698 = vsub.f32 %v696, %v697
      %v699 = vand.u32 %v698, 4294901760
      %700 = vmatprep.subr.mxu0 %v699
      %v701 = vand.u32 %v320, 4294901760
      %v702 = vsub.f32 %v320, %v701
      %v703 = vand.u32 %v702, 4294901760
      %v704 = vsub.f32 %v702, %v703
      %v705 = vand.u32 %v704, 4294901760
      %706 = vmatpush1.msra.mxu0 %v705
      %v707 = vand.u32 %v324, 4294901760
      %v708 = vsub.f32 %v324, %v707
      %v709 = vand.u32 %v708, 4294901760
      %v710 = vsub.f32 %v708, %v709
      %v711 = vand.u32 %v710, 4294901760
      %712 = vmatprep.subr.mxu0 %v711
      %v713 = vand.u32 %v323, 4294901760
      %v714 = vsub.f32 %v323, %v713
      %v715 = vand.u32 %v714, 4294901760
      %v716 = vsub.f32 %v714, %v715
      %v717 = vand.u32 %v716, 4294901760
      %718 = vmatpush1.msra.mxu0 %v717
      %v719 = vand.u32 %v350, 4294901760
      %v720 = vsub.f32 %v350, %v719
      %v721 = vand.u32 %v720, 4294901760
      %v722 = vsub.f32 %v720, %v721
      %v723 = vand.u32 %v722, 4294901760
      %724 = vmatprep.subr.mxu0 %v723
      %v725 = vand.u32 %v349, 4294901760
      %v726 = vsub.f32 %v349, %v725
      %v727 = vand.u32 %v726, 4294901760
      %v728 = vsub.f32 %v726, %v727
      %v729 = vand.u32 %v728, 4294901760
      %730 = vmatpush1.msra.mxu0 %v729
      %v731 = vand.u32 %v353, 4294901760
      %v732 = vsub.f32 %v353, %v731
      %v733 = vand.u32 %v732, 4294901760
      %v734 = vsub.f32 %v732, %v733
      %v735 = vand.u32 %v734, 4294901760
      %736 = vmatprep.subr.mxu0 %v735
      %v737 = vand.u32 %v352, 4294901760
      %v738 = vsub.f32 %v352, %v737
      %v739 = vand.u32 %v738, 4294901760
      %v740 = vsub.f32 %v738, %v739
      %v741 = vand.u32 %v740, 4294901760
      %742 = vmatpush1.msra.mxu0 %v741
      %v743 = vand.u32 %v379, 4294901760
      %v744 = vsub.f32 %v379, %v743
      %v745 = vand.u32 %v744, 4294901760
      %v746 = vsub.f32 %v744, %v745
      %v747 = vand.u32 %v746, 4294901760
      %748 = vmatprep.subr.mxu0 %v747
      %v749 = vand.u32 %v378, 4294901760
      %v750 = vsub.f32 %v378, %v749
      %v751 = vand.u32 %v750, 4294901760
      %v752 = vsub.f32 %v750, %v751
      %v753 = vand.u32 %v752, 4294901760
      %754 = vmatpush1.msra.mxu0 %v753
      %v755 = vand.u32 %v382, 4294901760
      %v756 = vsub.f32 %v382, %v755
      %v757 = vand.u32 %v756, 4294901760
      %v758 = vsub.f32 %v756, %v757
      %v759 = vand.u32 %v758, 4294901760
      %760 = vmatprep.subr.mxu0 %v759
      %v761 = vand.u32 %v381, 4294901760
      %v762 = vsub.f32 %v381, %v761
      %v763 = vand.u32 %v762, 4294901760
      %v764 = vsub.f32 %v762, %v763
      %v765 = vand.u32 %v764, 4294901760
      %766 = vmatpush1.msra.mxu0 %v765
      %v767 = vand.u32 %v408, 4294901760
      %v768 = vsub.f32 %v408, %v767
      %v769 = vand.u32 %v768, 4294901760
      %v770 = vsub.f32 %v768, %v769
      %v771 = vand.u32 %v770, 4294901760
      %772 = vmatprep.subr.mxu0 %v771
      %v773 = vand.u32 %v407, 4294901760
      %v774 = vsub.f32 %v407, %v773
      %v775 = vand.u32 %v774, 4294901760
      %v776 = vsub.f32 %v774, %v775
      %v777 = vand.u32 %v776, 4294901760
      %778 = vmatpush1.msra.mxu0 %v777
      %v779 = vand.u32 %v411, 4294901760
      %v780 = vsub.f32 %v411, %v779
      %v781 = vand.u32 %v780, 4294901760
      %v782 = vsub.f32 %v780, %v781
      %v783 = vand.u32 %v782, 4294901760
      %784 = vmatprep.subr.mxu0 %v783
      %v785 = vand.u32 %v410, 4294901760
      %v786 = vsub.f32 %v410, %v785
      %v787 = vand.u32 %v786, 4294901760
      %v788 = vsub.f32 %v786, %v787
      %v789 = vand.u32 %v788, 4294901760
      %790 = vmatpush1.msra.mxu0 %v789
      %791 = vmatprep.subr.mxu0 0.0
      %792 = vmatpush1.msra.mxu0 0.0
      %793 = vmatprep.subr.mxu0 0.0
      %794 = vmatpush1.msra.mxu0 0.0
      %795 = vmatprep.subr.mxu0 0.0
      %796 = vmatpush1.msra.mxu0 0.0
      %797 = vmatprep.subr.mxu0 0.0
      %798 = vmatpush1.msra.mxu0 0.0
      %799 = vmatprep.subr.mxu0 0.0
      %800 = vmatpush1.msra.mxu0 0.0
      %801 = vmatprep.subr.mxu0 0.0
      %802 = vmatpush1.msra.mxu0 0.0
      %803 = vmatprep.subr.mxu0 0.0
      %804 = vmatpush1.msra.mxu0 0.0
      %805 = vmatprep.subr.mxu0 0.0
      %806 = vmatpush1.msra.mxu0 0.0
      %807 = vmatprep.subr.mxu0 0.0
      %808 = vmatpush1.msra.mxu0 0.0
      %809 = vmatprep.subr.mxu0 0.0
      %810 = vmatpush1.msra.mxu0 0.0
      %811 = vmatprep.subr.mxu0 0.0
      %812 = vmatpush1.msra.mxu0 0.0
      %813 = vmatprep.subr.mxu0 0.0
      %814 = vmatpush1.msra.mxu0 0.0
      %815 = vmatprep.subr.mxu0 0.0
      %816 = vmatpush1.msra.mxu0 0.0
      %817 = vmatprep.subr.mxu0 0.0
      %818 = vmatpush1.msra.mxu0 0.0
      %v819 = vand.u32 %v437, 4294901760
      %820 = vmatprep.mubr.f32.mxu0 %v819
      %v821 = vand.u32 %v419, 4294901760
      %822 = vmatmul.mubr.f32.gmra.mrb[0].mxu0 %v821
      %v823 = vpop.f32.mrb[0].mxu0
      %v824 = vadd.f32 %v555, %v823
      %v825 = vpop.f32.mrb[0].mxu0
      %v826 = vadd.f32 %v557, %v825
      %v827 = vand.u32 %v440, 4294901760
      %828 = vmatprep.mubr.f32.mxu0 %v827
      %v829 = vand.u32 %v421, 4294901760
      %830 = vmatmul.mubr.f32.gmra.mrb[0].mxu0 %v829
      %v831 = vpop.f32.mrb[0].mxu0
      %v832 = vadd.f32 %v571, %v831
      %v833 = vpop.f32.mrb[0].mxu0
      %v834 = vadd.f32 %v573, %v833
      %835 = vdwg.mxu0
      %v836 = vand.u32 %v172, 4294901760
      %v837 = vsub.f32 %v172, %v836
      %838 = vmatprep.subr.mxu0 %v837
      %v839 = vand.u32 %v171, 4294901760
      %v840 = vsub.f32 %v171, %v839
      %841 = vmatpush1.msra.mxu0 %v840
      %v842 = vand.u32 %v175, 4294901760
      %v843 = vsub.f32 %v175, %v842
      %844 = vmatprep.subr.mxu0 %v843
      %v845 = vand.u32 %v174, 4294901760
      %v846 = vsub.f32 %v174, %v845
      %847 = vmatpush1.msra.mxu0 %v846
      %v848 = vand.u32 %v205, 4294901760
      %v849 = vsub.f32 %v205, %v848
      %850 = vmatprep.subr.mxu0 %v849
      %v851 = vand.u32 %v204, 4294901760
      %v852 = vsub.f32 %v204, %v851
      %853 = vmatpush1.msra.mxu0 %v852
      %v854 = vand.u32 %v208, 4294901760
      %v855 = vsub.f32 %v208, %v854
      %856 = vmatprep.subr.mxu0 %v855
      %v857 = vand.u32 %v207, 4294901760
      %v858 = vsub.f32 %v207, %v857
      %859 = vmatpush1.msra.mxu0 %v858
      %v860 = vand.u32 %v234, 4294901760
      %v861 = vsub.f32 %v234, %v860
      %862 = vmatprep.subr.mxu0 %v861
      %v863 = vand.u32 %v233, 4294901760
      %v864 = vsub.f32 %v233, %v863
      %865 = vmatpush1.msra.mxu0 %v864
      %v866 = vand.u32 %v237, 4294901760
      %v867 = vsub.f32 %v237, %v866
      %868 = vmatprep.subr.mxu0 %v867
      %v869 = vand.u32 %v236, 4294901760
      %v870 = vsub.f32 %v236, %v869
      %871 = vmatpush1.msra.mxu0 %v870
      %v872 = vand.u32 %v263, 4294901760
      %v873 = vsub.f32 %v263, %v872
      %874 = vmatprep.subr.mxu0 %v873
      %v875 = vand.u32 %v262, 4294901760
      %v876 = vsub.f32 %v262, %v875
      %877 = vmatpush1.msra.mxu0 %v876
      %v878 = vand.u32 %v266, 4294901760
      %v879 = vsub.f32 %v266, %v878
      %880 = vmatprep.subr.mxu0 %v879
      %v881 = vand.u32 %v265, 4294901760
      %v882 = vsub.f32 %v265, %v881
      %883 = vmatpush1.msra.mxu0 %v882
      %v884 = vand.u32 %v292, 4294901760
      %v885 = vsub.f32 %v292, %v884
      %886 = vmatprep.subr.mxu0 %v885
      %v887 = vand.u32 %v291, 4294901760
      %v888 = vsub.f32 %v291, %v887
      %889 = vmatpush1.msra.mxu0 %v888
      %v890 = vand.u32 %v295, 4294901760
      %v891 = vsub.f32 %v295, %v890
      %892 = vmatprep.subr.mxu0 %v891
      %v893 = vand.u32 %v294, 4294901760
      %v894 = vsub.f32 %v294, %v893
      %895 = vmatpush1.msra.mxu0 %v894
      %v896 = vand.u32 %v321, 4294901760
      %v897 = vsub.f32 %v321, %v896
      %898 = vmatprep.subr.mxu0 %v897
      %v899 = vand.u32 %v320, 4294901760
      %v900 = vsub.f32 %v320, %v899
      %901 = vmatpush1.msra.mxu0 %v900
      %v902 = vand.u32 %v324, 4294901760
      %v903 = vsub.f32 %v324, %v902
      %904 = vmatprep.subr.mxu0 %v903
      %v905 = vand.u32 %v323, 4294901760
      %v906 = vsub.f32 %v323, %v905
      %907 = vmatpush1.msra.mxu0 %v906
      %v908 = vand.u32 %v350, 4294901760
      %v909 = vsub.f32 %v350, %v908
      %910 = vmatprep.subr.mxu0 %v909
      %v911 = vand.u32 %v349, 4294901760
      %v912 = vsub.f32 %v349, %v911
      %913 = vmatpush1.msra.mxu0 %v912
      %v914 = vand.u32 %v353, 4294901760
      %v915 = vsub.f32 %v353, %v914
      %916 = vmatprep.subr.mxu0 %v915
      %v917 = vand.u32 %v352, 4294901760
      %v918 = vsub.f32 %v352, %v917
      %919 = vmatpush1.msra.mxu0 %v918
      %v920 = vand.u32 %v379, 4294901760
      %v921 = vsub.f32 %v379, %v920
      %922 = vmatprep.subr.mxu0 %v921
      %v923 = vand.u32 %v378, 4294901760
      %v924 = vsub.f32 %v378, %v923
      %925 = vmatpush1.msra.mxu0 %v924
      %v926 = vand.u32 %v382, 4294901760
      %v927 = vsub.f32 %v382, %v926
      %928 = vmatprep.subr.mxu0 %v927
      %v929 = vand.u32 %v381, 4294901760
      %v930 = vsub.f32 %v381, %v929
      %931 = vmatpush1.msra.mxu0 %v930
      %v932 = vand.u32 %v408, 4294901760
      %v933 = vsub.f32 %v408, %v932
      %934 = vmatprep.subr.mxu0 %v933
      %v935 = vand.u32 %v407, 4294901760
      %v936 = vsub.f32 %v407, %v935
      %937 = vmatpush1.msra.mxu0 %v936
      %v938 = vand.u32 %v411, 4294901760
      %v939 = vsub.f32 %v411, %v938
      %940 = vmatprep.subr.mxu0 %v939
      %v941 = vand.u32 %v410, 4294901760
      %v942 = vsub.f32 %v410, %v941
      %943 = vmatpush1.msra.mxu0 %v942
      %944 = vmatprep.subr.mxu0 0.0
      %945 = vmatpush1.msra.mxu0 0.0
      %946 = vmatprep.subr.mxu0 0.0
      %947 = vmatpush1.msra.mxu0 0.0
      %948 = vmatprep.subr.mxu0 0.0
      %949 = vmatpush1.msra.mxu0 0.0
      %950 = vmatprep.subr.mxu0 0.0
      %951 = vmatpush1.msra.mxu0 0.0
      %952 = vmatprep.subr.mxu0 0.0
      %953 = vmatpush1.msra.mxu0 0.0
      %954 = vmatprep.subr.mxu0 0.0
      %955 = vmatpush1.msra.mxu0 0.0
      %956 = vmatprep.subr.mxu0 0.0
      %957 = vmatpush1.msra.mxu0 0.0
      %958 = vmatprep.subr.mxu0 0.0
      %959 = vmatpush1.msra.mxu0 0.0
      %960 = vmatprep.subr.mxu0 0.0
      %961 = vmatpush1.msra.mxu0 0.0
      %962 = vmatprep.subr.mxu0 0.0
      %963 = vmatpush1.msra.mxu0 0.0
      %964 = vmatprep.subr.mxu0 0.0
      %965 = vmatpush1.msra.mxu0 0.0
      %966 = vmatprep.subr.mxu0 0.0
      %967 = vmatpush1.msra.mxu0 0.0
      %968 = vmatprep.subr.mxu0 0.0
      %969 = vmatpush1.msra.mxu0 0.0
      %970 = vmatprep.subr.mxu0 0.0
      %971 = vmatpush1.msra.mxu0 0.0
      %v972 = vand.u32 %v437, 4294901760
      %v973 = vsub.f32 %v437, %v972
      %974 = vmatprep.mubr.f32.mxu0 %v973
      %v975 = vand.u32 %v419, 4294901760
      %v976 = vsub.f32 %v419, %v975
      %977 = vmatmul.mubr.f32.gmra.mrb[0].mxu0 %v976
      %v978 = vpop.f32.mrb[0].mxu0
      %v979 = vadd.f32 %v824, %v978
      %v980 = vpop.f32.mrb[0].mxu0
      %v981 = vadd.f32 %v826, %v980
      %v982 = vand.u32 %v440, 4294901760
      %v983 = vsub.f32 %v440, %v982
      %984 = vmatprep.mubr.f32.mxu0 %v983
      %v985 = vand.u32 %v421, 4294901760
      %v986 = vsub.f32 %v421, %v985
      %987 = vmatmul.mubr.f32.gmra.mrb[0].mxu0 %v986
      %v988 = vpop.f32.mrb[0].mxu0
      %v989 = vadd.f32 %v832, %v988
      %v990 = vpop.f32.mrb[0].mxu0
      %v991 = vadd.f32 %v834, %v990
      %992 = vdwg.mxu0
      %v993 = vand.u32 %v172, 4294901760
      %994 = vmatprep.subr.mxu0 %v993
      %v995 = vand.u32 %v171, 4294901760
      %996 = vmatpush1.msra.mxu0 %v995
      %v997 = vand.u32 %v175, 4294901760
      %998 = vmatprep.subr.mxu0 %v997
      %v999 = vand.u32 %v174, 4294901760
      %1000 = vmatpush1.msra.mxu0 %v999
      %v1001 = vand.u32 %v205, 4294901760
      %1002 = vmatprep.subr.mxu0 %v1001
      %v1003 = vand.u32 %v204, 4294901760
      %1004 = vmatpush1.msra.mxu0 %v1003
      %v1005 = vand.u32 %v208, 4294901760
      %1006 = vmatprep.subr.mxu0 %v1005
      %v1007 = vand.u32 %v207, 4294901760
      %1008 = vmatpush1.msra.mxu0 %v1007
      %v1009 = vand.u32 %v234, 4294901760
      %1010 = vmatprep.subr.mxu0 %v1009
      %v1011 = vand.u32 %v233, 4294901760
      %1012 = vmatpush1.msra.mxu0 %v1011
      %v1013 = vand.u32 %v237, 4294901760
      %1014 = vmatprep.subr.mxu0 %v1013
      %v1015 = vand.u32 %v236, 4294901760
      %1016 = vmatpush1.msra.mxu0 %v1015
      %v1017 = vand.u32 %v263, 4294901760
      %1018 = vmatprep.subr.mxu0 %v1017
      %v1019 = vand.u32 %v262, 4294901760
      %1020 = vmatpush1.msra.mxu0 %v1019
      %v1021 = vand.u32 %v266, 4294901760
      %1022 = vmatprep.subr.mxu0 %v1021
      %v1023 = vand.u32 %v265, 4294901760
      %1024 = vmatpush1.msra.mxu0 %v1023
      %v1025 = vand.u32 %v292, 4294901760
      %1026 = vmatprep.subr.mxu0 %v1025
      %v1027 = vand.u32 %v291, 4294901760
      %1028 = vmatpush1.msra.mxu0 %v1027
      %v1029 = vand.u32 %v295, 4294901760
      %1030 = vmatprep.subr.mxu0 %v1029
      %v1031 = vand.u32 %v294, 4294901760
      %1032 = vmatpush1.msra.mxu0 %v1031
      %v1033 = vand.u32 %v321, 4294901760
      %1034 = vmatprep.subr.mxu0 %v1033
      %v1035 = vand.u32 %v320, 4294901760
      %1036 = vmatpush1.msra.mxu0 %v1035
      %v1037 = vand.u32 %v324, 4294901760
      %1038 = vmatprep.subr.mxu0 %v1037
      %v1039 = vand.u32 %v323, 4294901760
      %1040 = vmatpush1.msra.mxu0 %v1039
      %v1041 = vand.u32 %v350, 4294901760
      %1042 = vmatprep.subr.mxu0 %v1041
      %v1043 = vand.u32 %v349, 4294901760
      %1044 = vmatpush1.msra.mxu0 %v1043
      %v1045 = vand.u32 %v353, 4294901760
      %1046 = vmatprep.subr.mxu0 %v1045
      %v1047 = vand.u32 %v352, 4294901760
      %1048 = vmatpush1.msra.mxu0 %v1047
      %v1049 = vand.u32 %v379, 4294901760
      %1050 = vmatprep.subr.mxu0 %v1049
      %v1051 = vand.u32 %v378, 4294901760
      %1052 = vmatpush1.msra.mxu0 %v1051
      %v1053 = vand.u32 %v382, 4294901760
      %1054 = vmatprep.subr.mxu0 %v1053
      %v1055 = vand.u32 %v381, 4294901760
      %1056 = vmatpush1.msra.mxu0 %v1055
      %v1057 = vand.u32 %v408, 4294901760
      %1058 = vmatprep.subr.mxu0 %v1057
      %v1059 = vand.u32 %v407, 4294901760
      %1060 = vmatpush1.msra.mxu0 %v1059
      %v1061 = vand.u32 %v411, 4294901760
      %1062 = vmatprep.subr.mxu0 %v1061
      %v1063 = vand.u32 %v410, 4294901760
      %1064 = vmatpush1.msra.mxu0 %v1063
      %1065 = vmatprep.subr.mxu0 0.0
      %1066 = vmatpush1.msra.mxu0 0.0
      %1067 = vmatprep.subr.mxu0 0.0
      %1068 = vmatpush1.msra.mxu0 0.0
      %1069 = vmatprep.subr.mxu0 0.0
      %1070 = vmatpush1.msra.mxu0 0.0
      %1071 = vmatprep.subr.mxu0 0.0
      %1072 = vmatpush1.msra.mxu0 0.0
      %1073 = vmatprep.subr.mxu0 0.0
      %1074 = vmatpush1.msra.mxu0 0.0
      %1075 = vmatprep.subr.mxu0 0.0
      %1076 = vmatpush1.msra.mxu0 0.0
      %1077 = vmatprep.subr.mxu0 0.0
      %1078 = vmatpush1.msra.mxu0 0.0
      %1079 = vmatprep.subr.mxu0 0.0
      %1080 = vmatpush1.msra.mxu0 0.0
      %1081 = vmatprep.subr.mxu0 0.0
      %1082 = vmatpush1.msra.mxu0 0.0
      %1083 = vmatprep.subr.mxu0 0.0
      %1084 = vmatpush1.msra.mxu0 0.0
      %1085 = vmatprep.subr.mxu0 0.0
      %1086 = vmatpush1.msra.mxu0 0.0
      %1087 = vmatprep.subr.mxu0 0.0
      %1088 = vmatpush1.msra.mxu0 0.0
      %1089 = vmatprep.subr.mxu0 0.0
      %1090 = vmatpush1.msra.mxu0 0.0
      %1091 = vmatprep.subr.mxu0 0.0
      %1092 = vmatpush1.msra.mxu0 0.0
      %v1093 = vand.u32 %v437, 4294901760
      %v1094 = vsub.f32 %v437, %v1093
      %v1095 = vand.u32 %v1094, 4294901760
      %1096 = vmatprep.mubr.f32.mxu0 %v1095
      %v1097 = vand.u32 %v419, 4294901760
      %v1098 = vsub.f32 %v419, %v1097
      %v1099 = vand.u32 %v1098, 4294901760
      %1100 = vmatmul.mubr.f32.gmra.mrb[0].mxu0 %v1099
      %v1101 = vpop.f32.mrb[0].mxu0
      %v1102 = vadd.f32 %v979, %v1101
      %v1103 = vpop.f32.mrb[0].mxu0
      %v1104 = vadd.f32 %v981, %v1103
      %v1105 = vand.u32 %v440, 4294901760
      %v1106 = vsub.f32 %v440, %v1105
      %v1107 = vand.u32 %v1106, 4294901760
      %1108 = vmatprep.mubr.f32.mxu0 %v1107
      %v1109 = vand.u32 %v421, 4294901760
      %v1110 = vsub.f32 %v421, %v1109
      %v1111 = vand.u32 %v1110, 4294901760
      %1112 = vmatmul.mubr.f32.gmra.mrb[0].mxu0 %v1111
      %v1113 = vpop.f32.mrb[0].mxu0
      %v1114 = vadd.f32 %v989, %v1113
      %v1115 = vpop.f32.mrb[0].mxu0
      %v1116 = vadd.f32 %v991, %v1115
      %1117 = vdwg.mxu0
      %v1118 = vand.u32 %v172, 4294901760
      %v1119 = vsub.f32 %v172, %v1118
      %v1120 = vand.u32 %v1119, 4294901760
      %1121 = vmatprep.subr.mxu0 %v1120
      %v1122 = vand.u32 %v171, 4294901760
      %v1123 = vsub.f32 %v171, %v1122
      %v1124 = vand.u32 %v1123, 4294901760
      %1125 = vmatpush1.msra.mxu0 %v1124
      %v1126 = vand.u32 %v175, 4294901760
      %v1127 = vsub.f32 %v175, %v1126
      %v1128 = vand.u32 %v1127, 4294901760
      %1129 = vmatprep.subr.mxu0 %v1128
      %v1130 = vand.u32 %v174, 4294901760
      %v1131 = vsub.f32 %v174, %v1130
      %v1132 = vand.u32 %v1131, 4294901760
      %1133 = vmatpush1.msra.mxu0 %v1132
      %v1134 = vand.u32 %v205, 4294901760
      %v1135 = vsub.f32 %v205, %v1134
      %v1136 = vand.u32 %v1135, 4294901760
      %1137 = vmatprep.subr.mxu0 %v1136
      %v1138 = vand.u32 %v204, 4294901760
      %v1139 = vsub.f32 %v204, %v1138
      %v1140 = vand.u32 %v1139, 4294901760
      %1141 = vmatpush1.msra.mxu0 %v1140
      %v1142 = vand.u32 %v208, 4294901760
      %v1143 = vsub.f32 %v208, %v1142
      %v1144 = vand.u32 %v1143, 4294901760
      %1145 = vmatprep.subr.mxu0 %v1144
      %v1146 = vand.u32 %v207, 4294901760
      %v1147 = vsub.f32 %v207, %v1146
      %v1148 = vand.u32 %v1147, 4294901760
      %1149 = vmatpush1.msra.mxu0 %v1148
      %v1150 = vand.u32 %v234, 4294901760
      %v1151 = vsub.f32 %v234, %v1150
      %v1152 = vand.u32 %v1151, 4294901760
      %1153 = vmatprep.subr.mxu0 %v1152
      %v1154 = vand.u32 %v233, 4294901760
      %v1155 = vsub.f32 %v233, %v1154
      %v1156 = vand.u32 %v1155, 4294901760
      %1157 = vmatpush1.msra.mxu0 %v1156
      %v1158 = vand.u32 %v237, 4294901760
      %v1159 = vsub.f32 %v237, %v1158
      %v1160 = vand.u32 %v1159, 4294901760
      %1161 = vmatprep.subr.mxu0 %v1160
      %v1162 = vand.u32 %v236, 4294901760
      %v1163 = vsub.f32 %v236, %v1162
      %v1164 = vand.u32 %v1163, 4294901760
      %1165 = vmatpush1.msra.mxu0 %v1164
      %v1166 = vand.u32 %v263, 4294901760
      %v1167 = vsub.f32 %v263, %v1166
      %v1168 = vand.u32 %v1167, 4294901760
      %1169 = vmatprep.subr.mxu0 %v1168
      %v1170 = vand.u32 %v262, 4294901760
      %v1171 = vsub.f32 %v262, %v1170
      %v1172 = vand.u32 %v1171, 4294901760
      %1173 = vmatpush1.msra.mxu0 %v1172
      %v1174 = vand.u32 %v266, 4294901760
      %v1175 = vsub.f32 %v266, %v1174
      %v1176 = vand.u32 %v1175, 4294901760
      %1177 = vmatprep.subr.mxu0 %v1176
      %v1178 = vand.u32 %v265, 4294901760
      %v1179 = vsub.f32 %v265, %v1178
      %v1180 = vand.u32 %v1179, 4294901760
      %1181 = vmatpush1.msra.mxu0 %v1180
      %v1182 = vand.u32 %v292, 4294901760
      %v1183 = vsub.f32 %v292, %v1182
      %v1184 = vand.u32 %v1183, 4294901760
      %1185 = vmatprep.subr.mxu0 %v1184
      %v1186 = vand.u32 %v291, 4294901760
      %v1187 = vsub.f32 %v291, %v1186
      %v1188 = vand.u32 %v1187, 4294901760
      %1189 = vmatpush1.msra.mxu0 %v1188
      %v1190 = vand.u32 %v295, 4294901760
      %v1191 = vsub.f32 %v295, %v1190
      %v1192 = vand.u32 %v1191, 4294901760
      %1193 = vmatprep.subr.mxu0 %v1192
      %v1194 = vand.u32 %v294, 4294901760
      %v1195 = vsub.f32 %v294, %v1194
      %v1196 = vand.u32 %v1195, 4294901760
      %1197 = vmatpush1.msra.mxu0 %v1196
      %v1198 = vand.u32 %v321, 4294901760
      %v1199 = vsub.f32 %v321, %v1198
      %v1200 = vand.u32 %v1199, 4294901760
      %1201 = vmatprep.subr.mxu0 %v1200
      %v1202 = vand.u32 %v320, 4294901760
      %v1203 = vsub.f32 %v320, %v1202
      %v1204 = vand.u32 %v1203, 4294901760
      %1205 = vmatpush1.msra.mxu0 %v1204
      %v1206 = vand.u32 %v324, 4294901760
      %v1207 = vsub.f32 %v324, %v1206
      %v1208 = vand.u32 %v1207, 4294901760
      %1209 = vmatprep.subr.mxu0 %v1208
      %v1210 = vand.u32 %v323, 4294901760
      %v1211 = vsub.f32 %v323, %v1210
      %v1212 = vand.u32 %v1211, 4294901760
      %1213 = vmatpush1.msra.mxu0 %v1212
      %v1214 = vand.u32 %v350, 4294901760
      %v1215 = vsub.f32 %v350, %v1214
      %v1216 = vand.u32 %v1215, 4294901760
      %1217 = vmatprep.subr.mxu0 %v1216
      %v1218 = vand.u32 %v349, 4294901760
      %v1219 = vsub.f32 %v349, %v1218
      %v1220 = vand.u32 %v1219, 4294901760
      %1221 = vmatpush1.msra.mxu0 %v1220
      %v1222 = vand.u32 %v353, 4294901760
      %v1223 = vsub.f32 %v353, %v1222
      %v1224 = vand.u32 %v1223, 4294901760
      %1225 = vmatprep.subr.mxu0 %v1224
      %v1226 = vand.u32 %v352, 4294901760
      %v1227 = vsub.f32 %v352, %v1226
      %v1228 = vand.u32 %v1227, 4294901760
      %1229 = vmatpush1.msra.mxu0 %v1228
      %v1230 = vand.u32 %v379, 4294901760
      %v1231 = vsub.f32 %v379, %v1230
      %v1232 = vand.u32 %v1231, 4294901760
      %1233 = vmatprep.subr.mxu0 %v1232
      %v1234 = vand.u32 %v378, 4294901760
      %v1235 = vsub.f32 %v378, %v1234
      %v1236 = vand.u32 %v1235, 4294901760
      %1237 = vmatpush1.msra.mxu0 %v1236
      %v1238 = vand.u32 %v382, 4294901760
      %v1239 = vsub.f32 %v382, %v1238
      %v1240 = vand.u32 %v1239, 4294901760
      %1241 = vmatprep.subr.mxu0 %v1240
      %v1242 = vand.u32 %v381, 4294901760
      %v1243 = vsub.f32 %v381, %v1242
      %v1244 = vand.u32 %v1243, 4294901760
      %1245 = vmatpush1.msra.mxu0 %v1244
      %v1246 = vand.u32 %v408, 4294901760
      %v1247 = vsub.f32 %v408, %v1246
      %v1248 = vand.u32 %v1247, 4294901760
      %1249 = vmatprep.subr.mxu0 %v1248
      %v1250 = vand.u32 %v407, 4294901760
      %v1251 = vsub.f32 %v407, %v1250
      %v1252 = vand.u32 %v1251, 4294901760
      %1253 = vmatpush1.msra.mxu0 %v1252
      %v1254 = vand.u32 %v411, 4294901760
      %v1255 = vsub.f32 %v411, %v1254
      %v1256 = vand.u32 %v1255, 4294901760
      %1257 = vmatprep.subr.mxu0 %v1256
      %v1258 = vand.u32 %v410, 4294901760
      %v1259 = vsub.f32 %v410, %v1258
      %v1260 = vand.u32 %v1259, 4294901760
      %1261 = vmatpush1.msra.mxu0 %v1260
      %1262 = vmatprep.subr.mxu0 0.0
      %1263 = vmatpush1.msra.mxu0 0.0
      %1264 = vmatprep.subr.mxu0 0.0
      %1265 = vmatpush1.msra.mxu0 0.0
      %1266 = vmatprep.subr.mxu0 0.0
      %1267 = vmatpush1.msra.mxu0 0.0
      %1268 = vmatprep.subr.mxu0 0.0
      %1269 = vmatpush1.msra.mxu0 0.0
      %1270 = vmatprep.subr.mxu0 0.0
      %1271 = vmatpush1.msra.mxu0 0.0
      %1272 = vmatprep.subr.mxu0 0.0
      %1273 = vmatpush1.msra.mxu0 0.0
      %1274 = vmatprep.subr.mxu0 0.0
      %1275 = vmatpush1.msra.mxu0 0.0
      %1276 = vmatprep.subr.mxu0 0.0
      %1277 = vmatpush1.msra.mxu0 0.0
      %1278 = vmatprep.subr.mxu0 0.0
      %1279 = vmatpush1.msra.mxu0 0.0
      %1280 = vmatprep.subr.mxu0 0.0
      %1281 = vmatpush1.msra.mxu0 0.0
      %1282 = vmatprep.subr.mxu0 0.0
      %1283 = vmatpush1.msra.mxu0 0.0
      %1284 = vmatprep.subr.mxu0 0.0
      %1285 = vmatpush1.msra.mxu0 0.0
      %1286 = vmatprep.subr.mxu0 0.0
      %1287 = vmatpush1.msra.mxu0 0.0
      %1288 = vmatprep.subr.mxu0 0.0
      %1289 = vmatpush1.msra.mxu0 0.0
      %v1290 = vand.u32 %v437, 4294901760
      %1291 = vmatprep.mubr.f32.mxu0 %v1290
      %v1292 = vand.u32 %v419, 4294901760
      %1293 = vmatmul.mubr.f32.gmra.mrb[0].mxu0 %v1292
      %v1294 = vpop.f32.mrb[0].mxu0
      %v1295 = vadd.f32 %v1102, %v1294
      %v1296 = vpop.f32.mrb[0].mxu0
      %v1297 = vadd.f32 %v1104, %v1296
      %v1298 = vand.u32 %v440, 4294901760
      %1299 = vmatprep.mubr.f32.mxu0 %v1298
      %v1300 = vand.u32 %v421, 4294901760
      %1301 = vmatmul.mubr.f32.gmra.mrb[0].mxu0 %v1300
      %v1302 = vpop.f32.mrb[0].mxu0
      %v1303 = vadd.f32 %v1114, %v1302
      %v1304 = vpop.f32.mrb[0].mxu0
      %v1305 = vadd.f32 %v1116, %v1304
      %1306 = vdwg.mxu0
      %v1307 = vand.u32 %v172, 4294901760
      %1308 = vmatprep.subr.mxu0 %v1307
      %v1309 = vand.u32 %v171, 4294901760
      %1310 = vmatpush1.msra.mxu0 %v1309
      %v1311 = vand.u32 %v175, 4294901760
      %1312 = vmatprep.subr.mxu0 %v1311
      %v1313 = vand.u32 %v174, 4294901760
      %1314 = vmatpush1.msra.mxu0 %v1313
      %v1315 = vand.u32 %v205, 4294901760
      %1316 = vmatprep.subr.mxu0 %v1315
      %v1317 = vand.u32 %v204, 4294901760
      %1318 = vmatpush1.msra.mxu0 %v1317
      %v1319 = vand.u32 %v208, 4294901760
      %1320 = vmatprep.subr.mxu0 %v1319
      %v1321 = vand.u32 %v207, 4294901760
      %1322 = vmatpush1.msra.mxu0 %v1321
      %v1323 = vand.u32 %v234, 4294901760
      %1324 = vmatprep.subr.mxu0 %v1323
      %v1325 = vand.u32 %v233, 4294901760
      %1326 = vmatpush1.msra.mxu0 %v1325
      %v1327 = vand.u32 %v237, 4294901760
      %1328 = vmatprep.subr.mxu0 %v1327
      %v1329 = vand.u32 %v236, 4294901760
      %1330 = vmatpush1.msra.mxu0 %v1329
      %v1331 = vand.u32 %v263, 4294901760
      %1332 = vmatprep.subr.mxu0 %v1331
      %v1333 = vand.u32 %v262, 4294901760
      %1334 = vmatpush1.msra.mxu0 %v1333
      %v1335 = vand.u32 %v266, 4294901760
      %1336 = vmatprep.subr.mxu0 %v1335
      %v1337 = vand.u32 %v265, 4294901760
      %1338 = vmatpush1.msra.mxu0 %v1337
      %v1339 = vand.u32 %v292, 4294901760
      %1340 = vmatprep.subr.mxu0 %v1339
      %v1341 = vand.u32 %v291, 4294901760
      %1342 = vmatpush1.msra.mxu0 %v1341
      %v1343 = vand.u32 %v295, 4294901760
      %1344 = vmatprep.subr.mxu0 %v1343
      %v1345 = vand.u32 %v294, 4294901760
      %1346 = vmatpush1.msra.mxu0 %v1345
      %v1347 = vand.u32 %v321, 4294901760
      %1348 = vmatprep.subr.mxu0 %v1347
      %v1349 = vand.u32 %v320, 4294901760
      %1350 = vmatpush1.msra.mxu0 %v1349
      %v1351 = vand.u32 %v324, 4294901760
      %1352 = vmatprep.subr.mxu0 %v1351
      %v1353 = vand.u32 %v323, 4294901760
      %1354 = vmatpush1.msra.mxu0 %v1353
      %v1355 = vand.u32 %v350, 4294901760
      %1356 = vmatprep.subr.mxu0 %v1355
      %v1357 = vand.u32 %v349, 4294901760
      %1358 = vmatpush1.msra.mxu0 %v1357
      %v1359 = vand.u32 %v353, 4294901760
      %1360 = vmatprep.subr.mxu0 %v1359
      %v1361 = vand.u32 %v352, 4294901760
      %1362 = vmatpush1.msra.mxu0 %v1361
      %v1363 = vand.u32 %v379, 4294901760
      %1364 = vmatprep.subr.mxu0 %v1363
      %v1365 = vand.u32 %v378, 4294901760
      %1366 = vmatpush1.msra.mxu0 %v1365
      %v1367 = vand.u32 %v382, 4294901760
      %1368 = vmatprep.subr.mxu0 %v1367
      %v1369 = vand.u32 %v381, 4294901760
      %1370 = vmatpush1.msra.mxu0 %v1369
      %v1371 = vand.u32 %v408, 4294901760
      %1372 = vmatprep.subr.mxu0 %v1371
      %v1373 = vand.u32 %v407, 4294901760
      %1374 = vmatpush1.msra.mxu0 %v1373
      %v1375 = vand.u32 %v411, 4294901760
      %1376 = vmatprep.subr.mxu0 %v1375
      %v1377 = vand.u32 %v410, 4294901760
      %1378 = vmatpush1.msra.mxu0 %v1377
      %1379 = vmatprep.subr.mxu0 0.0
      %1380 = vmatpush1.msra.mxu0 0.0
      %1381 = vmatprep.subr.mxu0 0.0
      %1382 = vmatpush1.msra.mxu0 0.0
      %1383 = vmatprep.subr.mxu0 0.0
      %1384 = vmatpush1.msra.mxu0 0.0
      %1385 = vmatprep.subr.mxu0 0.0
      %1386 = vmatpush1.msra.mxu0 0.0
      %1387 = vmatprep.subr.mxu0 0.0
      %1388 = vmatpush1.msra.mxu0 0.0
      %1389 = vmatprep.subr.mxu0 0.0
      %1390 = vmatpush1.msra.mxu0 0.0
      %1391 = vmatprep.subr.mxu0 0.0
      %1392 = vmatpush1.msra.mxu0 0.0
      %1393 = vmatprep.subr.mxu0 0.0
      %1394 = vmatpush1.msra.mxu0 0.0
      %1395 = vmatprep.subr.mxu0 0.0
      %1396 = vmatpush1.msra.mxu0 0.0
      %1397 = vmatprep.subr.mxu0 0.0
      %1398 = vmatpush1.msra.mxu0 0.0
      %1399 = vmatprep.subr.mxu0 0.0
      %1400 = vmatpush1.msra.mxu0 0.0
      %1401 = vmatprep.subr.mxu0 0.0
      %1402 = vmatpush1.msra.mxu0 0.0
      %1403 = vmatprep.subr.mxu0 0.0
      %1404 = vmatpush1.msra.mxu0 0.0
      %1405 = vmatprep.subr.mxu0 0.0
      %1406 = vmatpush1.msra.mxu0 0.0
      %v1407 = vand.u32 %v437, 4294901760
      %1408 = vmatprep.mubr.f32.mxu0 %v1407
      %v1409 = vand.u32 %v419, 4294901760
      %1410 = vmatmul.mubr.f32.gmra.mrb[0].mxu0 %v1409
      %v1411 = vpop.f32.mrb[0].mxu0
      %v1412 = vadd.f32 %v1295, %v1411
      %v1413 = vpop.f32.mrb[0].mxu0
      %v1414 = vadd.f32 %v1297, %v1413
      %v1415 = vand.u32 %v440, 4294901760
      %1416 = vmatprep.mubr.f32.mxu0 %v1415
      %v1417 = vand.u32 %v421, 4294901760
      %1418 = vmatmul.mubr.f32.gmra.mrb[0].mxu0 %v1417
      %v1419 = vpop.f32.mrb[0].mxu0
      %v1420 = vadd.f32 %v1303, %v1419
      %v1421 = vpop.f32.mrb[0].mxu0
      %v1422 = vadd.f32 %v1305, %v1421
      %1423 = vdwg.mxu0
      %1424 = vmatprep.subr.mxu0 0.0
      %v1425 = vand.u32 %v173, 4294901760
      %1426 = vmatpush1.msra.mxu0 %v1425
      %1427 = vmatprep.subr.mxu0 0.0
      %v1428 = vand.u32 %v176, 4294901760
      %1429 = vmatpush1.msra.mxu0 %v1428
      %1430 = vmatprep.subr.mxu0 0.0
      %v1431 = vand.u32 %v206, 4294901760
      %1432 = vmatpush1.msra.mxu0 %v1431
      %1433 = vmatprep.subr.mxu0 0.0
      %v1434 = vand.u32 %v209, 4294901760
      %1435 = vmatpush1.msra.mxu0 %v1434
      %1436 = vmatprep.subr.mxu0 0.0
      %v1437 = vand.u32 %v235, 4294901760
      %1438 = vmatpush1.msra.mxu0 %v1437
      %1439 = vmatprep.subr.mxu0 0.0
      %v1440 = vand.u32 %v238, 4294901760
      %1441 = vmatpush1.msra.mxu0 %v1440
      %1442 = vmatprep.subr.mxu0 0.0
      %v1443 = vand.u32 %v264, 4294901760
      %1444 = vmatpush1.msra.mxu0 %v1443
      %1445 = vmatprep.subr.mxu0 0.0
      %v1446 = vand.u32 %v267, 4294901760
      %1447 = vmatpush1.msra.mxu0 %v1446
      %1448 = vmatprep.subr.mxu0 0.0
      %v1449 = vand.u32 %v293, 4294901760
      %1450 = vmatpush1.msra.mxu0 %v1449
      %1451 = vmatprep.subr.mxu0 0.0
      %v1452 = vand.u32 %v296, 4294901760
      %1453 = vmatpush1.msra.mxu0 %v1452
      %1454 = vmatprep.subr.mxu0 0.0
      %v1455 = vand.u32 %v322, 4294901760
      %1456 = vmatpush1.msra.mxu0 %v1455
      %1457 = vmatprep.subr.mxu0 0.0
      %v1458 = vand.u32 %v325, 4294901760
      %1459 = vmatpush1.msra.mxu0 %v1458
      %1460 = vmatprep.subr.mxu0 0.0
      %v1461 = vand.u32 %v351, 4294901760
      %1462 = vmatpush1.msra.mxu0 %v1461
      %1463 = vmatprep.subr.mxu0 0.0
      %v1464 = vand.u32 %v354, 4294901760
      %1465 = vmatpush1.msra.mxu0 %v1464
      %1466 = vmatprep.subr.mxu0 0.0
      %v1467 = vand.u32 %v380, 4294901760
      %1468 = vmatpush1.msra.mxu0 %v1467
      %1469 = vmatprep.subr.mxu0 0.0
      %v1470 = vand.u32 %v383, 4294901760
      %1471 = vmatpush1.msra.mxu0 %v1470
      %1472 = vmatprep.subr.mxu0 0.0
      %v1473 = vand.u32 %v409, 4294901760
      %1474 = vmatpush1.msra.mxu0 %v1473
      %1475 = vmatprep.subr.mxu0 0.0
      %v1476 = vand.u32 %v412, 4294901760
      %1477 = vmatpush1.msra.mxu0 %v1476
      %1478 = vmatprep.subr.mxu0 0.0
      %1479 = vmatpush1.msra.mxu0 0.0
      %1480 = vmatprep.subr.mxu0 0.0
      %1481 = vmatpush1.msra.mxu0 0.0
      %1482 = vmatprep.subr.mxu0 0.0
      %1483 = vmatpush1.msra.mxu0 0.0
      %1484 = vmatprep.subr.mxu0 0.0
      %1485 = vmatpush1.msra.mxu0 0.0
      %1486 = vmatprep.subr.mxu0 0.0
      %1487 = vmatpush1.msra.mxu0 0.0
      %1488 = vmatprep.subr.mxu0 0.0
      %1489 = vmatpush1.msra.mxu0 0.0
      %1490 = vmatprep.subr.mxu0 0.0
      %1491 = vmatpush1.msra.mxu0 0.0
      %1492 = vmatprep.subr.mxu0 0.0
      %1493 = vmatpush1.msra.mxu0 0.0
      %1494 = vmatprep.subr.mxu0 0.0
      %1495 = vmatpush1.msra.mxu0 0.0
      %1496 = vmatprep.subr.mxu0 0.0
      %1497 = vmatpush1.msra.mxu0 0.0
      %1498 = vmatprep.subr.mxu0 0.0
      %1499 = vmatpush1.msra.mxu0 0.0
      %1500 = vmatprep.subr.mxu0 0.0
      %1501 = vmatpush1.msra.mxu0 0.0
      %1502 = vmatprep.subr.mxu0 0.0
      %1503 = vmatpush1.msra.mxu0 0.0
      %1504 = vmatprep.subr.mxu0 0.0
      %1505 = vmatpush1.msra.mxu0 0.0
      %v1506 = vand.u32 %v437, 4294901760
      %v1507 = vsub.f32 %v437, %v1506
      %v1508 = vand.u32 %v1507, 4294901760
      %v1509 = vsub.f32 %v1507, %v1508
      %v1510 = vand.u32 %v1509, 4294901760
      %1511 = vmatprep.mubr.f32.mxu0 %v1510
      %v1512 = vand.u32 %v419, 4294901760
      %v1513 = vsub.f32 %v419, %v1512
      %v1514 = vand.u32 %v1513, 4294901760
      %v1515 = vsub.f32 %v1513, %v1514
      %v1516 = vand.u32 %v1515, 4294901760
      %1517 = vmatmul.mubr.f32.gmra.mrb[0].mxu0 %v1516
      %v1518 = vpop.f32.mrb[0].mxu0
      %v1519 = vadd.f32 %v428, %v1518
      %v1520 = vpop.f32.mrb[0].mxu0
      %v1521 = vand.u32 %v440, 4294901760
      %v1522 = vsub.f32 %v440, %v1521
      %v1523 = vand.u32 %v1522, 4294901760
      %v1524 = vsub.f32 %v1522, %v1523
      %v1525 = vand.u32 %v1524, 4294901760
      %1526 = vmatprep.mubr.f32.mxu0 %v1525
      %v1527 = vand.u32 %v421, 4294901760
      %v1528 = vsub.f32 %v421, %v1527
      %v1529 = vand.u32 %v1528, 4294901760
      %v1530 = vsub.f32 %v1528, %v1529
      %v1531 = vand.u32 %v1530, 4294901760
      %1532 = vmatmul.mubr.f32.gmra.mrb[0].mxu0 %v1531
      %v1533 = vpop.f32.mrb[0].mxu0
      %v1534 = vadd.f32 %v433, %v1533
      %v1535 = vpop.f32.mrb[0].mxu0
      %1536 = vdwg.mxu0
      %1537 = vmatprep.subr.mxu0 0.0
      %v1538 = vand.u32 %v173, 4294901760
      %v1539 = vsub.f32 %v173, %v1538
      %v1540 = vand.u32 %v1539, 4294901760
      %v1541 = vsub.f32 %v1539, %v1540
      %v1542 = vand.u32 %v1541, 4294901760
      %1543 = vmatpush1.msra.mxu0 %v1542
      %1544 = vmatprep.subr.mxu0 0.0
      %v1545 = vand.u32 %v176, 4294901760
      %v1546 = vsub.f32 %v176, %v1545
      %v1547 = vand.u32 %v1546, 4294901760
      %v1548 = vsub.f32 %v1546, %v1547
      %v1549 = vand.u32 %v1548, 4294901760
      %1550 = vmatpush1.msra.mxu0 %v1549
      %1551 = vmatprep.subr.mxu0 0.0
      %v1552 = vand.u32 %v206, 4294901760
      %v1553 = vsub.f32 %v206, %v1552
      %v1554 = vand.u32 %v1553, 4294901760
      %v1555 = vsub.f32 %v1553, %v1554
      %v1556 = vand.u32 %v1555, 4294901760
      %1557 = vmatpush1.msra.mxu0 %v1556
      %1558 = vmatprep.subr.mxu0 0.0
      %v1559 = vand.u32 %v209, 4294901760
      %v1560 = vsub.f32 %v209, %v1559
      %v1561 = vand.u32 %v1560, 4294901760
      %v1562 = vsub.f32 %v1560, %v1561
      %v1563 = vand.u32 %v1562, 4294901760
      %1564 = vmatpush1.msra.mxu0 %v1563
      %1565 = vmatprep.subr.mxu0 0.0
      %v1566 = vand.u32 %v235, 4294901760
      %v1567 = vsub.f32 %v235, %v1566
      %v1568 = vand.u32 %v1567, 4294901760
      %v1569 = vsub.f32 %v1567, %v1568
      %v1570 = vand.u32 %v1569, 4294901760
      %1571 = vmatpush1.msra.mxu0 %v1570
      %1572 = vmatprep.subr.mxu0 0.0
      %v1573 = vand.u32 %v238, 4294901760
      %v1574 = vsub.f32 %v238, %v1573
      %v1575 = vand.u32 %v1574, 4294901760
      %v1576 = vsub.f32 %v1574, %v1575
      %v1577 = vand.u32 %v1576, 4294901760
      %1578 = vmatpush1.msra.mxu0 %v1577
      %1579 = vmatprep.subr.mxu0 0.0
      %v1580 = vand.u32 %v264, 4294901760
      %v1581 = vsub.f32 %v264, %v1580
      %v1582 = vand.u32 %v1581, 4294901760
      %v1583 = vsub.f32 %v1581, %v1582
      %v1584 = vand.u32 %v1583, 4294901760
      %1585 = vmatpush1.msra.mxu0 %v1584
      %1586 = vmatprep.subr.mxu0 0.0
      %v1587 = vand.u32 %v267, 4294901760
      %v1588 = vsub.f32 %v267, %v1587
      %v1589 = vand.u32 %v1588, 4294901760
      %v1590 = vsub.f32 %v1588, %v1589
      %v1591 = vand.u32 %v1590, 4294901760
      %1592 = vmatpush1.msra.mxu0 %v1591
      %1593 = vmatprep.subr.mxu0 0.0
      %v1594 = vand.u32 %v293, 4294901760
      %v1595 = vsub.f32 %v293, %v1594
      %v1596 = vand.u32 %v1595, 4294901760
      %v1597 = vsub.f32 %v1595, %v1596
      %v1598 = vand.u32 %v1597, 4294901760
      %1599 = vmatpush1.msra.mxu0 %v1598
      %1600 = vmatprep.subr.mxu0 0.0
      %v1601 = vand.u32 %v296, 4294901760
      %v1602 = vsub.f32 %v296, %v1601
      %v1603 = vand.u32 %v1602, 4294901760
      %v1604 = vsub.f32 %v1602, %v1603
      %v1605 = vand.u32 %v1604, 4294901760
      %1606 = vmatpush1.msra.mxu0 %v1605
      %1607 = vmatprep.subr.mxu0 0.0
      %v1608 = vand.u32 %v322, 4294901760
      %v1609 = vsub.f32 %v322, %v1608
      %v1610 = vand.u32 %v1609, 4294901760
      %v1611 = vsub.f32 %v1609, %v1610
      %v1612 = vand.u32 %v1611, 4294901760
      %1613 = vmatpush1.msra.mxu0 %v1612
      %1614 = vmatprep.subr.mxu0 0.0
      %v1615 = vand.u32 %v325, 4294901760
      %v1616 = vsub.f32 %v325, %v1615
      %v1617 = vand.u32 %v1616, 4294901760
      %v1618 = vsub.f32 %v1616, %v1617
      %v1619 = vand.u32 %v1618, 4294901760
      %1620 = vmatpush1.msra.mxu0 %v1619
      %1621 = vmatprep.subr.mxu0 0.0
      %v1622 = vand.u32 %v351, 4294901760
      %v1623 = vsub.f32 %v351, %v1622
      %v1624 = vand.u32 %v1623, 4294901760
      %v1625 = vsub.f32 %v1623, %v1624
      %v1626 = vand.u32 %v1625, 4294901760
      %1627 = vmatpush1.msra.mxu0 %v1626
      %1628 = vmatprep.subr.mxu0 0.0
      %v1629 = vand.u32 %v354, 4294901760
      %v1630 = vsub.f32 %v354, %v1629
      %v1631 = vand.u32 %v1630, 4294901760
      %v1632 = vsub.f32 %v1630, %v1631
      %v1633 = vand.u32 %v1632, 4294901760
      %1634 = vmatpush1.msra.mxu0 %v1633
      %1635 = vmatprep.subr.mxu0 0.0
      %v1636 = vand.u32 %v380, 4294901760
      %v1637 = vsub.f32 %v380, %v1636
      %v1638 = vand.u32 %v1637, 4294901760
      %v1639 = vsub.f32 %v1637, %v1638
      %v1640 = vand.u32 %v1639, 4294901760
      %1641 = vmatpush1.msra.mxu0 %v1640
      %1642 = vmatprep.subr.mxu0 0.0
      %v1643 = vand.u32 %v383, 4294901760
      %v1644 = vsub.f32 %v383, %v1643
      %v1645 = vand.u32 %v1644, 4294901760
      %v1646 = vsub.f32 %v1644, %v1645
      %v1647 = vand.u32 %v1646, 4294901760
      %1648 = vmatpush1.msra.mxu0 %v1647
      %1649 = vmatprep.subr.mxu0 0.0
      %v1650 = vand.u32 %v409, 4294901760
      %v1651 = vsub.f32 %v409, %v1650
      %v1652 = vand.u32 %v1651, 4294901760
      %v1653 = vsub.f32 %v1651, %v1652
      %v1654 = vand.u32 %v1653, 4294901760
      %1655 = vmatpush1.msra.mxu0 %v1654
      %1656 = vmatprep.subr.mxu0 0.0
      %v1657 = vand.u32 %v412, 4294901760
      %v1658 = vsub.f32 %v412, %v1657
      %v1659 = vand.u32 %v1658, 4294901760
      %v1660 = vsub.f32 %v1658, %v1659
      %v1661 = vand.u32 %v1660, 4294901760
      %1662 = vmatpush1.msra.mxu0 %v1661
      %1663 = vmatprep.subr.mxu0 0.0
      %1664 = vmatpush1.msra.mxu0 0.0
      %1665 = vmatprep.subr.mxu0 0.0
      %1666 = vmatpush1.msra.mxu0 0.0
      %1667 = vmatprep.subr.mxu0 0.0
      %1668 = vmatpush1.msra.mxu0 0.0
      %1669 = vmatprep.subr.mxu0 0.0
      %1670 = vmatpush1.msra.mxu0 0.0
      %1671 = vmatprep.subr.mxu0 0.0
      %1672 = vmatpush1.msra.mxu0 0.0
      %1673 = vmatprep.subr.mxu0 0.0
      %1674 = vmatpush1.msra.mxu0 0.0
      %1675 = vmatprep.subr.mxu0 0.0
      %1676 = vmatpush1.msra.mxu0 0.0
      %1677 = vmatprep.subr.mxu0 0.0
      %1678 = vmatpush1.msra.mxu0 0.0
      %1679 = vmatprep.subr.mxu0 0.0
      %1680 = vmatpush1.msra.mxu0 0.0
      %1681 = vmatprep.subr.mxu0 0.0
      %1682 = vmatpush1.msra.mxu0 0.0
      %1683 = vmatprep.subr.mxu0 0.0
      %1684 = vmatpush1.msra.mxu0 0.0
      %1685 = vmatprep.subr.mxu0 0.0
      %1686 = vmatpush1.msra.mxu0 0.0
      %1687 = vmatprep.subr.mxu0 0.0
      %1688 = vmatpush1.msra.mxu0 0.0
      %1689 = vmatprep.subr.mxu0 0.0
      %1690 = vmatpush1.msra.mxu0 0.0
      %v1691 = vand.u32 %v437, 4294901760
      %1692 = vmatprep.mubr.f32.mxu0 %v1691
      %v1693 = vand.u32 %v419, 4294901760
      %1694 = vmatmul.mubr.f32.gmra.mrb[0].mxu0 %v1693
      %v1695 = vpop.f32.mrb[0].mxu0
      %v1696 = vadd.f32 %v1519, %v1695
      %v1697 = vpop.f32.mrb[0].mxu0
      %v1698 = vand.u32 %v440, 4294901760
      %1699 = vmatprep.mubr.f32.mxu0 %v1698
      %v1700 = vand.u32 %v421, 4294901760
      %1701 = vmatmul.mubr.f32.gmra.mrb[0].mxu0 %v1700
      %v1702 = vpop.f32.mrb[0].mxu0
      %v1703 = vadd.f32 %v1534, %v1702
      %v1704 = vpop.f32.mrb[0].mxu0
      %1705 = vdwg.mxu0
      %1706 = vmatprep.subr.mxu0 0.0
      %v1707 = vand.u32 %v173, 4294901760
      %v1708 = vsub.f32 %v173, %v1707
      %1709 = vmatpush1.msra.mxu0 %v1708
      %1710 = vmatprep.subr.mxu0 0.0
      %v1711 = vand.u32 %v176, 4294901760
      %v1712 = vsub.f32 %v176, %v1711
      %1713 = vmatpush1.msra.mxu0 %v1712
      %1714 = vmatprep.subr.mxu0 0.0
      %v1715 = vand.u32 %v206, 4294901760
      %v1716 = vsub.f32 %v206, %v1715
      %1717 = vmatpush1.msra.mxu0 %v1716
      %1718 = vmatprep.subr.mxu0 0.0
      %v1719 = vand.u32 %v209, 4294901760
      %v1720 = vsub.f32 %v209, %v1719
      %1721 = vmatpush1.msra.mxu0 %v1720
      %1722 = vmatprep.subr.mxu0 0.0
      %v1723 = vand.u32 %v235, 4294901760
      %v1724 = vsub.f32 %v235, %v1723
      %1725 = vmatpush1.msra.mxu0 %v1724
      %1726 = vmatprep.subr.mxu0 0.0
      %v1727 = vand.u32 %v238, 4294901760
      %v1728 = vsub.f32 %v238, %v1727
      %1729 = vmatpush1.msra.mxu0 %v1728
      %1730 = vmatprep.subr.mxu0 0.0
      %v1731 = vand.u32 %v264, 4294901760
      %v1732 = vsub.f32 %v264, %v1731
      %1733 = vmatpush1.msra.mxu0 %v1732
      %1734 = vmatprep.subr.mxu0 0.0
      %v1735 = vand.u32 %v267, 4294901760
      %v1736 = vsub.f32 %v267, %v1735
      %1737 = vmatpush1.msra.mxu0 %v1736
      %1738 = vmatprep.subr.mxu0 0.0
      %v1739 = vand.u32 %v293, 4294901760
      %v1740 = vsub.f32 %v293, %v1739
      %1741 = vmatpush1.msra.mxu0 %v1740
      %1742 = vmatprep.subr.mxu0 0.0
      %v1743 = vand.u32 %v296, 4294901760
      %v1744 = vsub.f32 %v296, %v1743
      %1745 = vmatpush1.msra.mxu0 %v1744
      %1746 = vmatprep.subr.mxu0 0.0
      %v1747 = vand.u32 %v322, 4294901760
      %v1748 = vsub.f32 %v322, %v1747
      %1749 = vmatpush1.msra.mxu0 %v1748
      %1750 = vmatprep.subr.mxu0 0.0
      %v1751 = vand.u32 %v325, 4294901760
      %v1752 = vsub.f32 %v325, %v1751
      %1753 = vmatpush1.msra.mxu0 %v1752
      %1754 = vmatprep.subr.mxu0 0.0
      %v1755 = vand.u32 %v351, 4294901760
      %v1756 = vsub.f32 %v351, %v1755
      %1757 = vmatpush1.msra.mxu0 %v1756
      %1758 = vmatprep.subr.mxu0 0.0
      %v1759 = vand.u32 %v354, 4294901760
      %v1760 = vsub.f32 %v354, %v1759
      %1761 = vmatpush1.msra.mxu0 %v1760
      %1762 = vmatprep.subr.mxu0 0.0
      %v1763 = vand.u32 %v380, 4294901760
      %v1764 = vsub.f32 %v380, %v1763
      %1765 = vmatpush1.msra.mxu0 %v1764
      %1766 = vmatprep.subr.mxu0 0.0
      %v1767 = vand.u32 %v383, 4294901760
      %v1768 = vsub.f32 %v383, %v1767
      %1769 = vmatpush1.msra.mxu0 %v1768
      %1770 = vmatprep.subr.mxu0 0.0
      %v1771 = vand.u32 %v409, 4294901760
      %v1772 = vsub.f32 %v409, %v1771
      %1773 = vmatpush1.msra.mxu0 %v1772
      %1774 = vmatprep.subr.mxu0 0.0
      %v1775 = vand.u32 %v412, 4294901760
      %v1776 = vsub.f32 %v412, %v1775
      %1777 = vmatpush1.msra.mxu0 %v1776
      %1778 = vmatprep.subr.mxu0 0.0
      %1779 = vmatpush1.msra.mxu0 0.0
      %1780 = vmatprep.subr.mxu0 0.0
      %1781 = vmatpush1.msra.mxu0 0.0
      %1782 = vmatprep.subr.mxu0 0.0
      %1783 = vmatpush1.msra.mxu0 0.0
      %1784 = vmatprep.subr.mxu0 0.0
      %1785 = vmatpush1.msra.mxu0 0.0
      %1786 = vmatprep.subr.mxu0 0.0
      %1787 = vmatpush1.msra.mxu0 0.0
      %1788 = vmatprep.subr.mxu0 0.0
      %1789 = vmatpush1.msra.mxu0 0.0
      %1790 = vmatprep.subr.mxu0 0.0
      %1791 = vmatpush1.msra.mxu0 0.0
      %1792 = vmatprep.subr.mxu0 0.0
      %1793 = vmatpush1.msra.mxu0 0.0
      %1794 = vmatprep.subr.mxu0 0.0
      %1795 = vmatpush1.msra.mxu0 0.0
      %1796 = vmatprep.subr.mxu0 0.0
      %1797 = vmatpush1.msra.mxu0 0.0
      %1798 = vmatprep.subr.mxu0 0.0
      %1799 = vmatpush1.msra.mxu0 0.0
      %1800 = vmatprep.subr.mxu0 0.0
      %1801 = vmatpush1.msra.mxu0 0.0
      %1802 = vmatprep.subr.mxu0 0.0
      %1803 = vmatpush1.msra.mxu0 0.0
      %1804 = vmatprep.subr.mxu0 0.0
      %1805 = vmatpush1.msra.mxu0 0.0
      %v1806 = vand.u32 %v437, 4294901760
      %v1807 = vsub.f32 %v437, %v1806
      %1808 = vmatprep.mubr.f32.mxu0 %v1807
      %v1809 = vand.u32 %v419, 4294901760
      %v1810 = vsub.f32 %v419, %v1809
      %1811 = vmatmul.mubr.f32.gmra.mrb[0].mxu0 %v1810
      %v1812 = vpop.f32.mrb[0].mxu0
      %v1813 = vadd.f32 %v1696, %v1812
      %v1814 = vpop.f32.mrb[0].mxu0
      %v1815 = vand.u32 %v440, 4294901760
      %v1816 = vsub.f32 %v440, %v1815
      %1817 = vmatprep.mubr.f32.mxu0 %v1816
      %v1818 = vand.u32 %v421, 4294901760
      %v1819 = vsub.f32 %v421, %v1818
      %1820 = vmatmul.mubr.f32.gmra.mrb[0].mxu0 %v1819
      %v1821 = vpop.f32.mrb[0].mxu0
      %v1822 = vadd.f32 %v1703, %v1821
      %v1823 = vpop.f32.mrb[0].mxu0
      %1824 = vdwg.mxu0
      %1825 = vmatprep.subr.mxu0 0.0
      %v1826 = vand.u32 %v173, 4294901760
      %1827 = vmatpush1.msra.mxu0 %v1826
      %1828 = vmatprep.subr.mxu0 0.0
      %v1829 = vand.u32 %v176, 4294901760
      %1830 = vmatpush1.msra.mxu0 %v1829
      %1831 = vmatprep.subr.mxu0 0.0
      %v1832 = vand.u32 %v206, 4294901760
      %1833 = vmatpush1.msra.mxu0 %v1832
      %1834 = vmatprep.subr.mxu0 0.0
      %v1835 = vand.u32 %v209, 4294901760
      %1836 = vmatpush1.msra.mxu0 %v1835
      %1837 = vmatprep.subr.mxu0 0.0
      %v1838 = vand.u32 %v235, 4294901760
      %1839 = vmatpush1.msra.mxu0 %v1838
      %1840 = vmatprep.subr.mxu0 0.0
      %v1841 = vand.u32 %v238, 4294901760
      %1842 = vmatpush1.msra.mxu0 %v1841
      %1843 = vmatprep.subr.mxu0 0.0
      %v1844 = vand.u32 %v264, 4294901760
      %1845 = vmatpush1.msra.mxu0 %v1844
      %1846 = vmatprep.subr.mxu0 0.0
      %v1847 = vand.u32 %v267, 4294901760
      %1848 = vmatpush1.msra.mxu0 %v1847
      %1849 = vmatprep.subr.mxu0 0.0
      %v1850 = vand.u32 %v293, 4294901760
      %1851 = vmatpush1.msra.mxu0 %v1850
      %1852 = vmatprep.subr.mxu0 0.0
      %v1853 = vand.u32 %v296, 4294901760
      %1854 = vmatpush1.msra.mxu0 %v1853
      %1855 = vmatprep.subr.mxu0 0.0
      %v1856 = vand.u32 %v322, 4294901760
      %1857 = vmatpush1.msra.mxu0 %v1856
      %1858 = vmatprep.subr.mxu0 0.0
      %v1859 = vand.u32 %v325, 4294901760
      %1860 = vmatpush1.msra.mxu0 %v1859
      %1861 = vmatprep.subr.mxu0 0.0
      %v1862 = vand.u32 %v351, 4294901760
      %1863 = vmatpush1.msra.mxu0 %v1862
      %1864 = vmatprep.subr.mxu0 0.0
      %v1865 = vand.u32 %v354, 4294901760
      %1866 = vmatpush1.msra.mxu0 %v1865
      %1867 = vmatprep.subr.mxu0 0.0
      %v1868 = vand.u32 %v380, 4294901760
      %1869 = vmatpush1.msra.mxu0 %v1868
      %1870 = vmatprep.subr.mxu0 0.0
      %v1871 = vand.u32 %v383, 4294901760
      %1872 = vmatpush1.msra.mxu0 %v1871
      %1873 = vmatprep.subr.mxu0 0.0
      %v1874 = vand.u32 %v409, 4294901760
      %1875 = vmatpush1.msra.mxu0 %v1874
      %1876 = vmatprep.subr.mxu0 0.0
      %v1877 = vand.u32 %v412, 4294901760
      %1878 = vmatpush1.msra.mxu0 %v1877
      %1879 = vmatprep.subr.mxu0 0.0
      %1880 = vmatpush1.msra.mxu0 0.0
      %1881 = vmatprep.subr.mxu0 0.0
      %1882 = vmatpush1.msra.mxu0 0.0
      %1883 = vmatprep.subr.mxu0 0.0
      %1884 = vmatpush1.msra.mxu0 0.0
      %1885 = vmatprep.subr.mxu0 0.0
      %1886 = vmatpush1.msra.mxu0 0.0
      %1887 = vmatprep.subr.mxu0 0.0
      %1888 = vmatpush1.msra.mxu0 0.0
      %1889 = vmatprep.subr.mxu0 0.0
      %1890 = vmatpush1.msra.mxu0 0.0
      %1891 = vmatprep.subr.mxu0 0.0
      %1892 = vmatpush1.msra.mxu0 0.0
      %1893 = vmatprep.subr.mxu0 0.0
      %1894 = vmatpush1.msra.mxu0 0.0
      %1895 = vmatprep.subr.mxu0 0.0
      %1896 = vmatpush1.msra.mxu0 0.0
      %1897 = vmatprep.subr.mxu0 0.0
      %1898 = vmatpush1.msra.mxu0 0.0
      %1899 = vmatprep.subr.mxu0 0.0
      %1900 = vmatpush1.msra.mxu0 0.0
      %1901 = vmatprep.subr.mxu0 0.0
      %1902 = vmatpush1.msra.mxu0 0.0
      %1903 = vmatprep.subr.mxu0 0.0
      %1904 = vmatpush1.msra.mxu0 0.0
      %1905 = vmatprep.subr.mxu0 0.0
      %1906 = vmatpush1.msra.mxu0 0.0
      %v1907 = vand.u32 %v437, 4294901760
      %v1908 = vsub.f32 %v437, %v1907
      %v1909 = vand.u32 %v1908, 4294901760
      %1910 = vmatprep.mubr.f32.mxu0 %v1909
      %v1911 = vand.u32 %v419, 4294901760
      %v1912 = vsub.f32 %v419, %v1911
      %v1913 = vand.u32 %v1912, 4294901760
      %1914 = vmatmul.mubr.f32.gmra.mrb[0].mxu0 %v1913
      %v1915 = vpop.f32.mrb[0].mxu0
      %v1916 = vadd.f32 %v1813, %v1915
      %v1917 = vpop.f32.mrb[0].mxu0
      %v1918 = vand.u32 %v440, 4294901760
      %v1919 = vsub.f32 %v440, %v1918
      %v1920 = vand.u32 %v1919, 4294901760
      %1921 = vmatprep.mubr.f32.mxu0 %v1920
      %v1922 = vand.u32 %v421, 4294901760
      %v1923 = vsub.f32 %v421, %v1922
      %v1924 = vand.u32 %v1923, 4294901760
      %1925 = vmatmul.mubr.f32.gmra.mrb[0].mxu0 %v1924
      %v1926 = vpop.f32.mrb[0].mxu0
      %v1927 = vadd.f32 %v1822, %v1926
      %v1928 = vpop.f32.mrb[0].mxu0
      %1929 = vdwg.mxu0
      %1930 = vmatprep.subr.mxu0 0.0
      %v1931 = vand.u32 %v173, 4294901760
      %v1932 = vsub.f32 %v173, %v1931
      %v1933 = vand.u32 %v1932, 4294901760
      %1934 = vmatpush1.msra.mxu0 %v1933
      %1935 = vmatprep.subr.mxu0 0.0
      %v1936 = vand.u32 %v176, 4294901760
      %v1937 = vsub.f32 %v176, %v1936
      %v1938 = vand.u32 %v1937, 4294901760
      %1939 = vmatpush1.msra.mxu0 %v1938
      %1940 = vmatprep.subr.mxu0 0.0
      %v1941 = vand.u32 %v206, 4294901760
      %v1942 = vsub.f32 %v206, %v1941
      %v1943 = vand.u32 %v1942, 4294901760
      %1944 = vmatpush1.msra.mxu0 %v1943
      %1945 = vmatprep.subr.mxu0 0.0
      %v1946 = vand.u32 %v209, 4294901760
      %v1947 = vsub.f32 %v209, %v1946
      %v1948 = vand.u32 %v1947, 4294901760
      %1949 = vmatpush1.msra.mxu0 %v1948
      %1950 = vmatprep.subr.mxu0 0.0
      %v1951 = vand.u32 %v235, 4294901760
      %v1952 = vsub.f32 %v235, %v1951
      %v1953 = vand.u32 %v1952, 4294901760
      %1954 = vmatpush1.msra.mxu0 %v1953
      %1955 = vmatprep.subr.mxu0 0.0
      %v1956 = vand.u32 %v238, 4294901760
      %v1957 = vsub.f32 %v238, %v1956
      %v1958 = vand.u32 %v1957, 4294901760
      %1959 = vmatpush1.msra.mxu0 %v1958
      %1960 = vmatprep.subr.mxu0 0.0
      %v1961 = vand.u32 %v264, 4294901760
      %v1962 = vsub.f32 %v264, %v1961
      %v1963 = vand.u32 %v1962, 4294901760
      %1964 = vmatpush1.msra.mxu0 %v1963
      %1965 = vmatprep.subr.mxu0 0.0
      %v1966 = vand.u32 %v267, 4294901760
      %v1967 = vsub.f32 %v267, %v1966
      %v1968 = vand.u32 %v1967, 4294901760
      %1969 = vmatpush1.msra.mxu0 %v1968
      %1970 = vmatprep.subr.mxu0 0.0
      %v1971 = vand.u32 %v293, 4294901760
      %v1972 = vsub.f32 %v293, %v1971
      %v1973 = vand.u32 %v1972, 4294901760
      %1974 = vmatpush1.msra.mxu0 %v1973
      %1975 = vmatprep.subr.mxu0 0.0
      %v1976 = vand.u32 %v296, 4294901760
      %v1977 = vsub.f32 %v296, %v1976
      %v1978 = vand.u32 %v1977, 4294901760
      %1979 = vmatpush1.msra.mxu0 %v1978
      %1980 = vmatprep.subr.mxu0 0.0
      %v1981 = vand.u32 %v322, 4294901760
      %v1982 = vsub.f32 %v322, %v1981
      %v1983 = vand.u32 %v1982, 4294901760
      %1984 = vmatpush1.msra.mxu0 %v1983
      %1985 = vmatprep.subr.mxu0 0.0
      %v1986 = vand.u32 %v325, 4294901760
      %v1987 = vsub.f32 %v325, %v1986
      %v1988 = vand.u32 %v1987, 4294901760
      %1989 = vmatpush1.msra.mxu0 %v1988
      %1990 = vmatprep.subr.mxu0 0.0
      %v1991 = vand.u32 %v351, 4294901760
      %v1992 = vsub.f32 %v351, %v1991
      %v1993 = vand.u32 %v1992, 4294901760
      %1994 = vmatpush1.msra.mxu0 %v1993
      %1995 = vmatprep.subr.mxu0 0.0
      %v1996 = vand.u32 %v354, 4294901760
      %v1997 = vsub.f32 %v354, %v1996
      %v1998 = vand.u32 %v1997, 4294901760
      %1999 = vmatpush1.msra.mxu0 %v1998
      %2000 = vmatprep.subr.mxu0 0.0
      %v2001 = vand.u32 %v380, 4294901760
      %v2002 = vsub.f32 %v380, %v2001
      %v2003 = vand.u32 %v2002, 4294901760
      %2004 = vmatpush1.msra.mxu0 %v2003
      %2005 = vmatprep.subr.mxu0 0.0
      %v2006 = vand.u32 %v383, 4294901760
      %v2007 = vsub.f32 %v383, %v2006
      %v2008 = vand.u32 %v2007, 4294901760
      %2009 = vmatpush1.msra.mxu0 %v2008
      %2010 = vmatprep.subr.mxu0 0.0
      %v2011 = vand.u32 %v409, 4294901760
      %v2012 = vsub.f32 %v409, %v2011
      %v2013 = vand.u32 %v2012, 4294901760
      %2014 = vmatpush1.msra.mxu0 %v2013
      %2015 = vmatprep.subr.mxu0 0.0
      %v2016 = vand.u32 %v412, 4294901760
      %v2017 = vsub.f32 %v412, %v2016
      %v2018 = vand.u32 %v2017, 4294901760
      %2019 = vmatpush1.msra.mxu0 %v2018
      %2020 = vmatprep.subr.mxu0 0.0
      %2021 = vmatpush1.msra.mxu0 0.0
      %2022 = vmatprep.subr.mxu0 0.0
      %2023 = vmatpush1.msra.mxu0 0.0
      %2024 = vmatprep.subr.mxu0 0.0
      %2025 = vmatpush1.msra.mxu0 0.0
      %2026 = vmatprep.subr.mxu0 0.0
      %2027 = vmatpush1.msra.mxu0 0.0
      %2028 = vmatprep.subr.mxu0 0.0
      %2029 = vmatpush1.msra.mxu0 0.0
      %2030 = vmatprep.subr.mxu0 0.0
      %2031 = vmatpush1.msra.mxu0 0.0
      %2032 = vmatprep.subr.mxu0 0.0
      %2033 = vmatpush1.msra.mxu0 0.0
      %2034 = vmatprep.subr.mxu0 0.0
      %2035 = vmatpush1.msra.mxu0 0.0
      %2036 = vmatprep.subr.mxu0 0.0
      %2037 = vmatpush1.msra.mxu0 0.0
      %2038 = vmatprep.subr.mxu0 0.0
      %2039 = vmatpush1.msra.mxu0 0.0
      %2040 = vmatprep.subr.mxu0 0.0
      %2041 = vmatpush1.msra.mxu0 0.0
      %2042 = vmatprep.subr.mxu0 0.0
      %2043 = vmatpush1.msra.mxu0 0.0
      %2044 = vmatprep.subr.mxu0 0.0
      %2045 = vmatpush1.msra.mxu0 0.0
      %2046 = vmatprep.subr.mxu0 0.0
      %2047 = vmatpush1.msra.mxu0 0.0
      %v2048 = vand.u32 %v437, 4294901760
      %2049 = vmatprep.mubr.f32.mxu0 %v2048
      %v2050 = vand.u32 %v419, 4294901760
      %2051 = vmatmul.mubr.f32.gmra.mrb[0].mxu0 %v2050
      %v2052 = vpop.f32.mrb[0].mxu0
      %v2053 = vadd.f32 %v1916, %v2052
      %v2054 = vpop.f32.mrb[0].mxu0
      %v2055 = vand.u32 %v440, 4294901760
      %2056 = vmatprep.mubr.f32.mxu0 %v2055
      %v2057 = vand.u32 %v421, 4294901760
      %2058 = vmatmul.mubr.f32.gmra.mrb[0].mxu0 %v2057
      %v2059 = vpop.f32.mrb[0].mxu0
      %v2060 = vadd.f32 %v1927, %v2059
      %v2061 = vpop.f32.mrb[0].mxu0
      %2062 = vdwg.mxu0
      %2063 = vmatprep.subr.mxu0 0.0
      %v2064 = vand.u32 %v173, 4294901760
      %2065 = vmatpush1.msra.mxu0 %v2064
      %2066 = vmatprep.subr.mxu0 0.0
      %v2067 = vand.u32 %v176, 4294901760
      %2068 = vmatpush1.msra.mxu0 %v2067
      %2069 = vmatprep.subr.mxu0 0.0
      %v2070 = vand.u32 %v206, 4294901760
      %2071 = vmatpush1.msra.mxu0 %v2070
      %2072 = vmatprep.subr.mxu0 0.0
      %v2073 = vand.u32 %v209, 4294901760
      %2074 = vmatpush1.msra.mxu0 %v2073
      %2075 = vmatprep.subr.mxu0 0.0
      %v2076 = vand.u32 %v235, 4294901760
      %2077 = vmatpush1.msra.mxu0 %v2076
      %2078 = vmatprep.subr.mxu0 0.0
      %v2079 = vand.u32 %v238, 4294901760
      %2080 = vmatpush1.msra.mxu0 %v2079
      %2081 = vmatprep.subr.mxu0 0.0
      %v2082 = vand.u32 %v264, 4294901760
      %2083 = vmatpush1.msra.mxu0 %v2082
      %2084 = vmatprep.subr.mxu0 0.0
      %v2085 = vand.u32 %v267, 4294901760
      %2086 = vmatpush1.msra.mxu0 %v2085
      %2087 = vmatprep.subr.mxu0 0.0
      %v2088 = vand.u32 %v293, 4294901760
      %2089 = vmatpush1.msra.mxu0 %v2088
      %2090 = vmatprep.subr.mxu0 0.0
      %v2091 = vand.u32 %v296, 4294901760
      %2092 = vmatpush1.msra.mxu0 %v2091
      %2093 = vmatprep.subr.mxu0 0.0
      %v2094 = vand.u32 %v322, 4294901760
      %2095 = vmatpush1.msra.mxu0 %v2094
      %2096 = vmatprep.subr.mxu0 0.0
      %v2097 = vand.u32 %v325, 4294901760
      %2098 = vmatpush1.msra.mxu0 %v2097
      %2099 = vmatprep.subr.mxu0 0.0
      %v2100 = vand.u32 %v351, 4294901760
      %2101 = vmatpush1.msra.mxu0 %v2100
      %2102 = vmatprep.subr.mxu0 0.0
      %v2103 = vand.u32 %v354, 4294901760
      %2104 = vmatpush1.msra.mxu0 %v2103
      %2105 = vmatprep.subr.mxu0 0.0
      %v2106 = vand.u32 %v380, 4294901760
      %2107 = vmatpush1.msra.mxu0 %v2106
      %2108 = vmatprep.subr.mxu0 0.0
      %v2109 = vand.u32 %v383, 4294901760
      %2110 = vmatpush1.msra.mxu0 %v2109
      %2111 = vmatprep.subr.mxu0 0.0
      %v2112 = vand.u32 %v409, 4294901760
      %2113 = vmatpush1.msra.mxu0 %v2112
      %2114 = vmatprep.subr.mxu0 0.0
      %v2115 = vand.u32 %v412, 4294901760
      %2116 = vmatpush1.msra.mxu0 %v2115
      %2117 = vmatprep.subr.mxu0 0.0
      %2118 = vmatpush1.msra.mxu0 0.0
      %2119 = vmatprep.subr.mxu0 0.0
      %2120 = vmatpush1.msra.mxu0 0.0
      %2121 = vmatprep.subr.mxu0 0.0
      %2122 = vmatpush1.msra.mxu0 0.0
      %2123 = vmatprep.subr.mxu0 0.0
      %2124 = vmatpush1.msra.mxu0 0.0
      %2125 = vmatprep.subr.mxu0 0.0
      %2126 = vmatpush1.msra.mxu0 0.0
      %2127 = vmatprep.subr.mxu0 0.0
      %2128 = vmatpush1.msra.mxu0 0.0
      %2129 = vmatprep.subr.mxu0 0.0
      %2130 = vmatpush1.msra.mxu0 0.0
      %2131 = vmatprep.subr.mxu0 0.0
      %2132 = vmatpush1.msra.mxu0 0.0
      %2133 = vmatprep.subr.mxu0 0.0
      %2134 = vmatpush1.msra.mxu0 0.0
      %2135 = vmatprep.subr.mxu0 0.0
      %2136 = vmatpush1.msra.mxu0 0.0
      %2137 = vmatprep.subr.mxu0 0.0
      %2138 = vmatpush1.msra.mxu0 0.0
      %2139 = vmatprep.subr.mxu0 0.0
      %2140 = vmatpush1.msra.mxu0 0.0
      %2141 = vmatprep.subr.mxu0 0.0
      %2142 = vmatpush1.msra.mxu0 0.0
      %2143 = vmatprep.subr.mxu0 0.0
      %2144 = vmatpush1.msra.mxu0 0.0
      %v2145 = vand.u32 %v437, 4294901760
      %2146 = vmatprep.mubr.f32.mxu0 %v2145
      %v2147 = vand.u32 %v419, 4294901760
      %2148 = vmatmul.mubr.f32.gmra.mrb[0].mxu0 %v2147
      %v2149 = vpop.f32.mrb[0].mxu0
      %v2150 = vadd.f32 %v2053, %v2149
      %v2151 = vpop.f32.mrb[0].mxu0
      %v2152 = vand.u32 %v440, 4294901760
      %2153 = vmatprep.mubr.f32.mxu0 %v2152
      %v2154 = vand.u32 %v421, 4294901760
      %2155 = vmatmul.mubr.f32.gmra.mrb[0].mxu0 %v2154
      %v2156 = vpop.f32.mrb[0].mxu0
      %v2157 = vadd.f32 %v2060, %v2156
      %v2158 = vpop.f32.mrb[0].mxu0
      %2159 = vdwg.mxu0
      %2160 = vst [vmem:[%s170] sm:$0xff] %v1412
      %2161 = vst [vmem:[%s170 + $0x8] sm:$0xff] %v1414
      %2162 = vst [vmem:[%s170 + $0x10] sm:$0xff] %v2150
      %2163 = vst [vmem:[%s170 + $0x18] sm:$0xff] %v1420
      %2164 = vst [vmem:[%s170 + $0x20] sm:$0xff] %v1422
      %2165 = vst [vmem:[%s170 + $0x28] sm:$0xff] %v2157
      %p2166 = scmp.lt.s32.totalorder %s14, 1
      %s2167 = scalar_select %p2166, %s14, 1
      %s2168 = smul.addr %s2167, 6
      %s2169 = smul.addr %s2168, 8
      %s2170 = scalar_lea.vmem %s3, %s2169
      // Predicated region
      $region33: #{hetconv_pallas.1} parent=31 // pred_check
        %p2171 = pneg %p100
      $region34: #{hetconv_pallas.1} parent=31 // pred_check_branch
        %2173 = sbr.rel (%p2171) target = $region36
      $region35: #{hetconv_pallas.1} parent=31 // pred_region
        _
      $region36: #{hetconv_pallas.1} parent=31 // pred_fallthru
        _
    $region32: #{hetconv_pallas.1} parent=5 // pred_fallthru
      _
    %p2174 = scmp.le.s32.totalorder 2, %s9
    // Predicated region
    $region37: #{hetconv_pallas.1} parent=5 // pred_check
      %p2175 = pneg %p2174
    $region38: #{hetconv_pallas.1} parent=5 // pred_check_branch
      %2177 = sbr.rel (%p2175) target = $region40
    $region39: #{hetconv_pallas.1} parent=5 // pred_region
      %s2178 = ssub.s32 %s9, 2
      // Predicated region
      $region41: #{hetconv_pallas.1} parent=39 // pred_check
        %p2179 = pneg %p106
      $region42: #{hetconv_pallas.1} parent=39 // pred_check_branch
        %2181 = sbr.rel (%p2179) target = $region44
      $region43: #{hetconv_pallas.1} parent=39 // pred_region
        %p2182 = scmp.lt.s32.totalorder %s15, 1
        %s2183 = scalar_select %p2182, %s15, 1
        %s2184 = smul.addr %s2183, 6
        %s2185 = smul.addr %s2184, 8
        %s2186 = scalar_lea.vmem %s3, %s2185
      $region44: #{hetconv_pallas.1} parent=39 // pred_fallthru
        _
    $region40: #{hetconv_pallas.1} parent=5 // pred_fallthru
      _
  $region6: #{hetconv_pallas.1} parent=0 // loop_footer
    %s13 = sadd.s32 1, %s9
  $region7: #{hetconv_pallas.1} parent=0 // loop_footer_branch
    %8 = sbr.rel target = $region3
  $region8: #{hetconv_pallas.1} parent=0 // loop_exit
    _

</llo_original>
